<compile_context>
chip_gen: v5e
topology: v5e:2x2
jax: 0.10.0
libtpu: 0.0.40
codegen_flags: <defaults>
</compile_context>

<pallas_src>
import functools

import jax
import jax.numpy as jnp
from jax.experimental import pallas as pl
from jax.experimental.pallas import tpu as pltpu

LATENT = 32
HIDDEN = 64


def vae_kernel(
    x_ref, eps_ref,
    ew1_ref, eb1_ref,          # encode_w1 : input_size -> 64
    w2s_ref, b2s_ref,          # [encode_w2 | encode_w22 | 0] : 64 -> OUT,
                               # bias also carries decode_w2's bias in its lanes
    dw1_ref, db1_ref,          # decode_w1 : 32 -> 64
    dw2s_ref,                  # decode_w2 placed in lanes [64:64+input_size) of OUT
    out_ref,                   # [TB, OUT] slab: mu | log_var | recon | 0
):
    x = x_ref[...]
    eps = eps_ref[...].astype(jnp.float32)

    # ---- encoder ----
    h = jnp.dot(x, ew1_ref[...], preferred_element_type=jnp.float32)
    h = jnp.maximum(h + eb1_ref[...].astype(jnp.float32), 0.0)   # relu

    # Fused mu/log_var projection, padded to OUT lanes (>=128 -> full-lane MXU
    # output, full-lane VPU adds).  Lanes [64:64+input_size) hold db2 (from the
    # packed bias) so the decoder matmul below can accumulate recon in place.
    mulv = (jnp.dot(h, w2s_ref[...], preferred_element_type=jnp.float32)
            + b2s_ref[...].astype(jnp.float32))
    mu = mulv[:, :LATENT]
    log_var = mulv[:, LATENT:HIDDEN]

    # ---- sampling (reparameterization): z = eps * exp(0.5*log_var) + mu ----
    z = eps * jnp.exp(0.5 * log_var) + mu

    # ---- decoder ----
    d = jnp.dot(z, dw1_ref[...], preferred_element_type=jnp.float32)
    d = jnp.maximum(d + db1_ref[...].astype(jnp.float32), 0.0)   # relu

    # recon lands in lanes [64:64+input_size); lanes [0:64) untouched (dw2s is
    # zero there), so slab = mu | log_var | (db2 + d @ dw2) | 0.
    slab = mulv + jnp.dot(d, dw2s_ref[...], preferred_element_type=jnp.float32)

    out_ref[...] = slab.astype(out_ref.dtype)   # single unmasked 128-lane store


@functools.partial(jax.jit, static_argnames=("tb",))
def vae_forward(x, eps, params, tb=2048):
    """x: [B, input_size], eps: [B, 32] (pre-drawn N(0,1)).

    Returns (recon [B, input_size], mu [B, 32], log_var [B, 32]), all f32.
    """
    B, input_size = x.shape
    ew1, eb1, ew2, eb2, ew22, eb22, dw1, db1, dw2, db2 = params

    # Output slab width: mu(32) | log_var(32) | recon(input_size) | pad -> x128
    OUT = ((HIDDEN + input_size + 127) // 128) * 128

    # Host-side one-time packing of the tiny second-layer / decoder-out weights
    # into slab-lane positions (zero lanes elsewhere).
    w2s = (jnp.zeros((HIDDEN, OUT), ew2.dtype)
           .at[:, :LATENT].set(ew2)
           .at[:, LATENT:HIDDEN].set(ew22))
    b2s = (jnp.zeros((1, OUT), eb2.dtype)
           .at[:, :LATENT].set(eb2)
           .at[:, LATENT:HIDDEN].set(eb22)
           .at[:, HIDDEN:HIDDEN + input_size].set(db2))
    dw2s = (jnp.zeros((HIDDEN, OUT), dw2.dtype)
            .at[:, HIDDEN:HIDDEN + input_size].set(dw2))

    # ---- batch tile selection ----
    TB = max(1, min(tb, B))
    if TB >= 8:
        TB = (TB // 8) * 8
    # If the whole batch fits in a single tile, halve it so a 2-TC chip (v7x
    # megacore) gets at least 2 grid steps to shard across cores.
    if (B + TB - 1) // TB == 1 and TB >= 16:
        TB = max(8, (((TB // 2) + 7) // 8) * 8)
    grid = ((B + TB - 1) // TB,)   # no host-side padding: Pallas masks the edge block

    act = lambda F: pl.BlockSpec((TB, F), lambda i: (i, 0))
    res = lambda a: pl.BlockSpec(a.shape, lambda i: (0, 0))   # resident across steps

    in_specs = [
        act(input_size),          # x
        act(LATENT),              # eps
        res(ew1), res(eb1),
        res(w2s), res(b2s),
        res(dw1), res(db1),
        res(dw2s),
    ]
    out_specs = pl.BlockSpec((TB, OUT), lambda i: (i, 0))
    out_shape = jax.ShapeDtypeStruct((B, OUT), jnp.float32)

    # ---- cost estimate (scheduling hint) ----
    flops = 2 * B * (input_size * HIDDEN + HIDDEN * OUT
                     + LATENT * HIDDEN + HIDDEN * OUT)
    transcendentals = B * LATENT
    weight_bytes = sum(int(a.size) * a.dtype.itemsize
                       for a in (ew1, eb1, w2s, b2s, dw1, db1, dw2s))
    bytes_accessed = (int(x.size) * x.dtype.itemsize
                      + int(eps.size) * eps.dtype.itemsize
                      + B * OUT * 4 + weight_bytes)
    cost = pl.CostEstimate(flops=flops, transcendentals=transcendentals,
                           bytes_accessed=bytes_accessed)

    # ---- explicit VMEM limit: double-buffered act tiles + resident weights ----
    in_tile = TB * (input_size * x.dtype.itemsize + LATENT * eps.dtype.itemsize)
    out_tile = TB * OUT * 4
    vmem_limit = int(min(32 << 20,
                         max(4 << 20,
                             2 * (in_tile + out_tile) + 2 * weight_bytes + (1 << 20))))

    slab = pl.pallas_call(
        vae_kernel,
        out_shape=out_shape,
        grid=grid,
        in_specs=in_specs,
        out_specs=out_specs,
        compiler_params=pltpu.CompilerParams(
            dimension_semantics=(pltpu.PARALLEL,),
            vmem_limit_bytes=vmem_limit,
        ),
        cost_estimate=cost,
    )(x, eps, ew1, eb1, w2s, b2s, dw1, db1, dw2s)

    mu = slab[:, :LATENT]
    log_var = slab[:, LATENT:HIDDEN]
    recon = slab[:, HIDDEN:HIDDEN + input_size]
    return recon, mu, log_var


def init_params(key, input_size):
    """Deterministic init mimicking nn.Linear default (uniform +-1/sqrt(fan_in)).

    Weights stored as [in, out]; biases as [1, out].
    """
    def linear(key, fan_in, fan_out):
        kw, kb = jax.random.split(key)
        bound = 1.0 / jnp.sqrt(fan_in)
        w = jax.random.uniform(kw, (fan_in, fan_out), jnp.float32, -bound, bound)
        b = jax.random.uniform(kb, (1, fan_out), jnp.float32, -bound, bound)
        return w, b

    keys = jax.random.split(key, 5)
    ew1, eb1 = linear(keys[0], input_size, HIDDEN)
    ew2, eb2 = linear(keys[1], HIDDEN, LATENT)
    ew22, eb22 = linear(keys[2], HIDDEN, LATENT)
    dw1, db1 = linear(keys[3], LATENT, HIDDEN)
    dw2, db2 = linear(keys[4], HIDDEN, input_size)
    return (ew1, eb1, ew2, eb2, ew22, eb22, dw1, db1, dw2, db2)


if __name__ == "__main__":
    key = jax.random.PRNGKey(0)
    k_params, k_x, k_eps = jax.random.split(key, 3)

    B, INPUT_SIZE = 512, 16     # small, but enough batch to exercise a 2-step grid

    params = init_params(k_params, INPUT_SIZE)
    x = jax.random.normal(k_x, (B, INPUT_SIZE), jnp.float32)
    eps = jax.random.normal(k_eps, (B, LATENT), jnp.float32)   # randn_like(std)

    recon, mu, log_var = vae_forward(x, eps, params)
    jax.block_until_ready((recon, mu, log_var))

    # quick sanity check against a pure-JAX reference
    ew1, eb1, ew2, eb2, ew22, eb22, dw1, db1, dw2, db2 = params
    h = jnp.maximum(x @ ew1 + eb1, 0.0)
    mu_r = h @ ew2 + eb2
    lv_r = h @ ew22 + eb22
    z = eps * jnp.exp(0.5 * lv_r) + mu_r
    d = jnp.maximum(z @ dw1 + db1, 0.0)
    recon_r = d @ dw2 + db2
    assert jnp.allclose(recon, recon_r, atol=1e-4, rtol=1e-4)
    assert jnp.allclose(mu, mu_r, atol=1e-4, rtol=1e-4)
    assert jnp.allclose(log_var, lv_r, atol=1e-4, rtol=1e-4)

    print("KERNEL_OK")
</pallas_src>

<mosaic_0001>
module attributes {stable_mosaic.version = 11 : i64} {
  func.func @vae_kernel(%arg0: i32, %arg1: memref<256x16xf32, #tpu.memory_space<vmem>>, %arg2: memref<256x32xf32, #tpu.memory_space<vmem>>, %arg3: memref<16x64xf32, #tpu.memory_space<vmem>>, %arg4: memref<1x64xf32, #tpu.memory_space<vmem>>, %arg5: memref<64x128xf32, #tpu.memory_space<vmem>>, %arg6: memref<1x128xf32, #tpu.memory_space<vmem>>, %arg7: memref<32x64xf32, #tpu.memory_space<vmem>>, %arg8: memref<1x64xf32, #tpu.memory_space<vmem>>, %arg9: memref<64x128xf32, #tpu.memory_space<vmem>>, %arg10: memref<256x128xf32, #tpu.memory_space<vmem>>) attributes {dimension_semantics = [#tpu.dimension_semantics<parallel>], iteration_bounds = array<i64: 2>, scalar_prefetch = 0 : i64, scratch_operands = 0 : i64, tpu.core_type = #tpu.core_type<tc>, window_params = [{transform_indices = @transform_0, window_bounds = array<i64: 256, 16>}, {transform_indices = @transform_1, window_bounds = array<i64: 256, 32>}, {pipeline_mode = #tpu.pipeline_mode<synchronous>, transform_indices = @transform_2, window_bounds = array<i64: 16, 64>}, {pipeline_mode = #tpu.pipeline_mode<synchronous>, transform_indices = @transform_3, window_bounds = array<i64: 1, 64>}, {pipeline_mode = #tpu.pipeline_mode<synchronous>, transform_indices = @transform_4, window_bounds = array<i64: 64, 128>}, {pipeline_mode = #tpu.pipeline_mode<synchronous>, transform_indices = @transform_5, window_bounds = array<i64: 1, 128>}, {pipeline_mode = #tpu.pipeline_mode<synchronous>, transform_indices = @transform_6, window_bounds = array<i64: 32, 64>}, {pipeline_mode = #tpu.pipeline_mode<synchronous>, transform_indices = @transform_7, window_bounds = array<i64: 1, 64>}, {pipeline_mode = #tpu.pipeline_mode<synchronous>, transform_indices = @transform_8, window_bounds = array<i64: 64, 128>}, {transform_indices = @transform_9, window_bounds = array<i64: 256, 128>}]} {
    %c0 = arith.constant 0 : index
    %c0_0 = arith.constant 0 : index
    %0 = vector.load %arg1[%c0, %c0_0] : memref<256x16xf32, #tpu.memory_space<vmem>>, vector<256x16xf32>
    %c0_1 = arith.constant 0 : index
    %c0_2 = arith.constant 0 : index
    %1 = vector.load %arg2[%c0_1, %c0_2] : memref<256x32xf32, #tpu.memory_space<vmem>>, vector<256x32xf32>
    %c0_3 = arith.constant 0 : index
    %c0_4 = arith.constant 0 : index
    %2 = vector.load %arg3[%c0_3, %c0_4] : memref<16x64xf32, #tpu.memory_space<vmem>>, vector<16x64xf32>
    %cst = arith.constant dense<0.000000e+00> : vector<256x64xf32>
    %3 = tpu.matmul %0, %2, %cst {dimension_numbers = #tpu.dot_dimension_numbers<[1], [0], [0], [1], [0, 0, 1, 1], [], []>} : vector<256x16xf32>, vector<16x64xf32>, vector<256x64xf32> -> vector<256x64xf32>
    %c0_5 = arith.constant 0 : index
    %c0_6 = arith.constant 0 : index
    %4 = vector.load %arg4[%c0_5, %c0_6] : memref<1x64xf32, #tpu.memory_space<vmem>>, vector<1x64xf32>
    %5 = vector.broadcast %4 : vector<1x64xf32> to vector<256x64xf32>
    %6 = arith.addf %3, %5 : vector<256x64xf32>
    %cst_7 = arith.constant 0.000000e+00 : f32
    %7 = vector.broadcast %cst_7 : f32 to vector<256x64xf32>
    %8 = arith.maximumf %6, %7 : vector<256x64xf32>
    %c0_8 = arith.constant 0 : index
    %c0_9 = arith.constant 0 : index
    %9 = vector.load %arg5[%c0_8, %c0_9] : memref<64x128xf32, #tpu.memory_space<vmem>>, vector<64x128xf32>
    %cst_10 = arith.constant dense<0.000000e+00> : vector<256x128xf32>
    %10 = tpu.matmul %8, %9, %cst_10 {dimension_numbers = #tpu.dot_dimension_numbers<[1], [0], [0], [1], [0, 0, 1, 1], [], []>} : vector<256x64xf32>, vector<64x128xf32>, vector<256x128xf32> -> vector<256x128xf32>
    %c0_11 = arith.constant 0 : index
    %c0_12 = arith.constant 0 : index
    %11 = vector.load %arg6[%c0_11, %c0_12] : memref<1x128xf32, #tpu.memory_space<vmem>>, vector<1x128xf32>
    %12 = vector.broadcast %11 : vector<1x128xf32> to vector<256x128xf32>
    %13 = arith.addf %10, %12 : vector<256x128xf32>
    %14 = vector.extract_strided_slice %13 {offsets = [0, 0], sizes = [256, 32], strides = [1, 1]} : vector<256x128xf32> to vector<256x32xf32>
    %15 = vector.extract_strided_slice %13 {offsets = [0, 32], sizes = [256, 32], strides = [1, 1]} : vector<256x128xf32> to vector<256x32xf32>
    %cst_13 = arith.constant 5.000000e-01 : f32
    %16 = vector.broadcast %cst_13 : f32 to vector<256x32xf32>
    %17 = arith.mulf %16, %15 : vector<256x32xf32>
    %18 = math.exp %17 : vector<256x32xf32>
    %19 = arith.mulf %1, %18 : vector<256x32xf32>
    %20 = arith.addf %19, %14 : vector<256x32xf32>
    %c0_14 = arith.constant 0 : index
    %c0_15 = arith.constant 0 : index
    %21 = vector.load %arg7[%c0_14, %c0_15] : memref<32x64xf32, #tpu.memory_space<vmem>>, vector<32x64xf32>
    %cst_16 = arith.constant dense<0.000000e+00> : vector<256x64xf32>
    %22 = tpu.matmul %20, %21, %cst_16 {dimension_numbers = #tpu.dot_dimension_numbers<[1], [0], [0], [1], [0, 0, 1, 1], [], []>} : vector<256x32xf32>, vector<32x64xf32>, vector<256x64xf32> -> vector<256x64xf32>
    %c0_17 = arith.constant 0 : index
    %c0_18 = arith.constant 0 : index
    %23 = vector.load %arg8[%c0_17, %c0_18] : memref<1x64xf32, #tpu.memory_space<vmem>>, vector<1x64xf32>
    %24 = vector.broadcast %23 : vector<1x64xf32> to vector<256x64xf32>
    %25 = arith.addf %22, %24 : vector<256x64xf32>
    %cst_19 = arith.constant 0.000000e+00 : f32
    %26 = vector.broadcast %cst_19 : f32 to vector<256x64xf32>
    %27 = arith.maximumf %25, %26 : vector<256x64xf32>
    %c0_20 = arith.constant 0 : index
    %c0_21 = arith.constant 0 : index
    %28 = vector.load %arg9[%c0_20, %c0_21] : memref<64x128xf32, #tpu.memory_space<vmem>>, vector<64x128xf32>
    %cst_22 = arith.constant dense<0.000000e+00> : vector<256x128xf32>
    %29 = tpu.matmul %27, %28, %cst_22 {dimension_numbers = #tpu.dot_dimension_numbers<[1], [0], [0], [1], [0, 0, 1, 1], [], []>} : vector<256x64xf32>, vector<64x128xf32>, vector<256x128xf32> -> vector<256x128xf32>
    %30 = arith.addf %13, %29 : vector<256x128xf32>
    %c0_23 = arith.constant 0 : index
    %c0_24 = arith.constant 0 : index
    %31 = vector.load %arg10[%c0_23, %c0_24] : memref<256x128xf32, #tpu.memory_space<vmem>>, vector<256x128xf32>
    tpu.vector_store %arg10[%c0_23, %c0_24], %30 {strides = array<i32>} : memref<256x128xf32, #tpu.memory_space<vmem>>, vector<256x128xf32>,
    return
  }
  func.func @transform_0(%arg0: i32) -> (i32, i32) {
    %c0_i32 = arith.constant 0 : i32
    %c0_i32_0 = arith.constant 0 : i32
    return %arg0, %c0_i32 : i32, i32
  }
  func.func @transform_1(%arg0: i32) -> (i32, i32) {
    %c0_i32 = arith.constant 0 : i32
    %c0_i32_0 = arith.constant 0 : i32
    return %arg0, %c0_i32 : i32, i32
  }
  func.func @transform_2(%arg0: i32) -> (i32, i32) {
    %c0_i32 = arith.constant 0 : i32
    %c0_i32_0 = arith.constant 0 : i32
    %c0_i32_1 = arith.constant 0 : i32
    return %c0_i32, %c0_i32_0 : i32, i32
  }
  func.func @transform_3(%arg0: i32) -> (i32, i32) {
    %c0_i32 = arith.constant 0 : i32
    %c0_i32_0 = arith.constant 0 : i32
    %c0_i32_1 = arith.constant 0 : i32
    return %c0_i32, %c0_i32_0 : i32, i32
  }
  func.func @transform_4(%arg0: i32) -> (i32, i32) {
    %c0_i32 = arith.constant 0 : i32
    %c0_i32_0 = arith.constant 0 : i32
    %c0_i32_1 = arith.constant 0 : i32
    return %c0_i32, %c0_i32_0 : i32, i32
  }
  func.func @transform_5(%arg0: i32) -> (i32, i32) {
    %c0_i32 = arith.constant 0 : i32
    %c0_i32_0 = arith.constant 0 : i32
    %c0_i32_1 = arith.constant 0 : i32
    return %c0_i32, %c0_i32_0 : i32, i32
  }
  func.func @transform_6(%arg0: i32) -> (i32, i32) {
    %c0_i32 = arith.constant 0 : i32
    %c0_i32_0 = arith.constant 0 : i32
    %c0_i32_1 = arith.constant 0 : i32
    return %c0_i32, %c0_i32_0 : i32, i32
  }
  func.func @transform_7(%arg0: i32) -> (i32, i32) {
    %c0_i32 = arith.constant 0 : i32
    %c0_i32_0 = arith.constant 0 : i32
    %c0_i32_1 = arith.constant 0 : i32
    return %c0_i32, %c0_i32_0 : i32, i32
  }
  func.func @transform_8(%arg0: i32) -> (i32, i32) {
    %c0_i32 = arith.constant 0 : i32
    %c0_i32_0 = arith.constant 0 : i32
    %c0_i32_1 = arith.constant 0 : i32
    return %c0_i32, %c0_i32_0 : i32, i32
  }
  func.func @transform_9(%arg0: i32) -> (i32, i32) {
    %c0_i32 = arith.constant 0 : i32
    %c0_i32_0 = arith.constant 0 : i32
    return %arg0, %c0_i32 : i32, i32
  }
}

</mosaic_0001>

<llo_original>
// kernel: vae_forward.1
$region0: #{vae_forward.1}
  #allocation0 [shape = 'u32[]', space=smem, size = 0x4, offset = 0x4, fixed_abs, tag = 'smem constant byte address 0x4 - core index']
  #allocation1 [shape = 'u32[72,128]{1,0:T(1,128)}', space=vmem, size = 0x9000, scoped, tag = 'internal scratch']
  %s0 = inlined_call_operand.vmem [shape: f32[512,16], index: 0, kind: input, shape index: {}]
  %s1 = inlined_call_operand.vmem [shape: f32[512,32], index: 1, kind: input, shape index: {}]
  %s2 = inlined_call_operand.vmem [shape: f32[16,64], index: 2, kind: input, shape index: {}]
  %s3 = inlined_call_operand.vmem [shape: f32[1,64], index: 3, kind: input, shape index: {}]
  %s4 = inlined_call_operand.vmem [shape: f32[64,128], index: 4, kind: input, shape index: {}]
  %s5 = inlined_call_operand.vmem [shape: f32[1,128], index: 5, kind: input, shape index: {}]
  %s6 = inlined_call_operand.vmem [shape: f32[32,64], index: 6, kind: input, shape index: {}]
  %s7 = inlined_call_operand.vmem [shape: f32[1,64], index: 7, kind: input, shape index: {}]
  %s8 = inlined_call_operand.vmem [shape: f32[64,128], index: 8, kind: input, shape index: {}]
  %s9 = inlined_call_operand.vmem [shape: f32[512,128], index: 9, kind: output, shape index: {}]
  %s10 = sld [smem:[#allocation0]]
  $region69: #{vae_forward.1} parent=0
    _
  %s12 = ssub.s32 1, %s10
  %s13 = scalar_select 0, %s12, %s10
  loop: start=0, step=1, limit=4
  $region2: #{vae_forward.1} parent=0 // loop_pre_header
    _
  $region3: #{vae_forward.1} parent=0 // loop_header
    %s15 = sphi 0, %s19
    %p16 = scmp.ge.s32.totalorder %s15, 4
    %s25 = sphi 0, %s27
    %s28 = sphi 0, %s25
    %s29 = sphi 0, %s28
    %s45 = sphi 0, %s29
    %s51 = sphi 0, %s53
    %s54 = sphi 0, %s51
    %s55 = sphi 0, %s54
    %s71 = sphi 0, %s55
    %s75 = sphi 0, %s75
    %s77 = sphi 0, %s75
    %s78 = sphi 0, %s77
    %s92 = sphi 0, %s78
    %s96 = sphi 0, %s96
    %s98 = sphi 0, %s96
    %s99 = sphi 0, %s98
    %s113 = sphi 0, %s99
    %s117 = sphi 0, %s117
    %s119 = sphi 0, %s117
    %s120 = sphi 0, %s119
    %s134 = sphi 0, %s120
    %s138 = sphi 0, %s138
    %s140 = sphi 0, %s138
    %s141 = sphi 0, %s140
    %s155 = sphi 0, %s141
    %s159 = sphi 0, %s159
    %s161 = sphi 0, %s159
    %s162 = sphi 0, %s161
    %s176 = sphi 0, %s162
    %s180 = sphi 0, %s180
    %s182 = sphi 0, %s180
    %s183 = sphi 0, %s182
    %s197 = sphi 0, %s183
    %s201 = sphi 0, %s201
    %s203 = sphi 0, %s201
    %s204 = sphi 0, %s203
    %s218 = sphi 0, %s204
    %s224 = sphi 0, %s226
    %s227 = sphi 0, %s224
    %s228 = sphi 0, %s227
    %s244 = sphi 0, %s228
  $region4: #{vae_forward.1} parent=0 // loop_header_branch
    %18 = sbr.rel (%p16) target = $region8
  $region5: #{vae_forward.1} parent=0 // loop_body
    %s20 = ssub.s32 %s15, 1
    %s21 = ssub.s32 %s15, 2
    %s22 = sadd.s32 %s15, 1
    %s23 = ssub.s32 %s15, %s22
    %p24 = scmp.eq.s32.totalorder %s23, 0
    %s26 = sadd.s32 %s25, 1
    %s27 = scalar_select %p24, %s25, %s26
    %p30 = pneg %p24
    %p31 = scmp.eq.s32.totalorder %s15, 1
    %p32 = por %p30, %p31
    %p33 = scmp.ne.s32.totalorder %s25, %s28
    %p34 = scmp.eq.s32.totalorder %s15, 0
    %p35 = por %p33, %p34
    %p36 = scmp.ne.s32.totalorder %s25, %s28
    %p37 = scmp.eq.s32.totalorder %s20, 1
    %p38 = por %p36, %p37
    %p39 = scmp.ne.s32.totalorder %s28, %s29
    %p40 = scmp.eq.s32.totalorder %s20, 0
    %p41 = por %p39, %p40
    %p42 = scmp.ne.s32.totalorder %s28, %s29
    %p43 = scmp.eq.s32.totalorder %s21, 1
    %p44 = por %p42, %p43
    %p46 = scmp.ne.s32.totalorder %s29, %s45
    %p47 = scmp.eq.s32.totalorder %s21, 0
    %p48 = por %p46, %p47
    %s49 = ssub.s32 %s15, %s22
    %p50 = scmp.eq.s32.totalorder %s49, 0
    %s52 = sadd.s32 %s51, 1
    %s53 = scalar_select %p50, %s51, %s52
    %p56 = pneg %p50
    %p57 = scmp.eq.s32.totalorder %s15, 1
    %p58 = por %p56, %p57
    %p59 = scmp.ne.s32.totalorder %s51, %s54
    %p60 = scmp.eq.s32.totalorder %s15, 0
    %p61 = por %p59, %p60
    %p62 = scmp.ne.s32.totalorder %s51, %s54
    %p63 = scmp.eq.s32.totalorder %s20, 1
    %p64 = por %p62, %p63
    %p65 = scmp.ne.s32.totalorder %s54, %s55
    %p66 = scmp.eq.s32.totalorder %s20, 0
    %p67 = por %p65, %p66
    %p68 = scmp.ne.s32.totalorder %s54, %s55
    %p69 = scmp.eq.s32.totalorder %s21, 1
    %p70 = por %p68, %p69
    %p72 = scmp.ne.s32.totalorder %s55, %s71
    %p73 = scmp.eq.s32.totalorder %s21, 0
    %p74 = por %p72, %p73
    %s76 = sadd.s32 %s75, 1
    %p79 = scmp.eq.s32.totalorder %s15, 1
    %p80 = scmp.ne.s32.totalorder %s75, %s77
    %p81 = scmp.eq.s32.totalorder %s15, 0
    %p82 = por %p80, %p81
    %p83 = scmp.ne.s32.totalorder %s75, %s77
    %p84 = scmp.eq.s32.totalorder %s20, 1
    %p85 = por %p83, %p84
    %p86 = scmp.ne.s32.totalorder %s77, %s78
    %p87 = scmp.eq.s32.totalorder %s20, 0
    %p88 = por %p86, %p87
    %p89 = scmp.ne.s32.totalorder %s77, %s78
    %p90 = scmp.eq.s32.totalorder %s21, 1
    %p91 = por %p89, %p90
    %p93 = scmp.ne.s32.totalorder %s78, %s92
    %p94 = scmp.eq.s32.totalorder %s21, 0
    %p95 = por %p93, %p94
    %s97 = sadd.s32 %s96, 1
    %p100 = scmp.eq.s32.totalorder %s15, 1
    %p101 = scmp.ne.s32.totalorder %s96, %s98
    %p102 = scmp.eq.s32.totalorder %s15, 0
    %p103 = por %p101, %p102
    %p104 = scmp.ne.s32.totalorder %s96, %s98
    %p105 = scmp.eq.s32.totalorder %s20, 1
    %p106 = por %p104, %p105
    %p107 = scmp.ne.s32.totalorder %s98, %s99
    %p108 = scmp.eq.s32.totalorder %s20, 0
    %p109 = por %p107, %p108
    %p110 = scmp.ne.s32.totalorder %s98, %s99
    %p111 = scmp.eq.s32.totalorder %s21, 1
    %p112 = por %p110, %p111
    %p114 = scmp.ne.s32.totalorder %s99, %s113
    %p115 = scmp.eq.s32.totalorder %s21, 0
    %p116 = por %p114, %p115
    %s118 = sadd.s32 %s117, 1
    %p121 = scmp.eq.s32.totalorder %s15, 1
    %p122 = scmp.ne.s32.totalorder %s117, %s119
    %p123 = scmp.eq.s32.totalorder %s15, 0
    %p124 = por %p122, %p123
    %p125 = scmp.ne.s32.totalorder %s117, %s119
    %p126 = scmp.eq.s32.totalorder %s20, 1
    %p127 = por %p125, %p126
    %p128 = scmp.ne.s32.totalorder %s119, %s120
    %p129 = scmp.eq.s32.totalorder %s20, 0
    %p130 = por %p128, %p129
    %p131 = scmp.ne.s32.totalorder %s119, %s120
    %p132 = scmp.eq.s32.totalorder %s21, 1
    %p133 = por %p131, %p132
    %p135 = scmp.ne.s32.totalorder %s120, %s134
    %p136 = scmp.eq.s32.totalorder %s21, 0
    %p137 = por %p135, %p136
    %s139 = sadd.s32 %s138, 1
    %p142 = scmp.eq.s32.totalorder %s15, 1
    %p143 = scmp.ne.s32.totalorder %s138, %s140
    %p144 = scmp.eq.s32.totalorder %s15, 0
    %p145 = por %p143, %p144
    %p146 = scmp.ne.s32.totalorder %s138, %s140
    %p147 = scmp.eq.s32.totalorder %s20, 1
    %p148 = por %p146, %p147
    %p149 = scmp.ne.s32.totalorder %s140, %s141
    %p150 = scmp.eq.s32.totalorder %s20, 0
    %p151 = por %p149, %p150
    %p152 = scmp.ne.s32.totalorder %s140, %s141
    %p153 = scmp.eq.s32.totalorder %s21, 1
    %p154 = por %p152, %p153
    %p156 = scmp.ne.s32.totalorder %s141, %s155
    %p157 = scmp.eq.s32.totalorder %s21, 0
    %p158 = por %p156, %p157
    %s160 = sadd.s32 %s159, 1
    %p163 = scmp.eq.s32.totalorder %s15, 1
    %p164 = scmp.ne.s32.totalorder %s159, %s161
    %p165 = scmp.eq.s32.totalorder %s15, 0
    %p166 = por %p164, %p165
    %p167 = scmp.ne.s32.totalorder %s159, %s161
    %p168 = scmp.eq.s32.totalorder %s20, 1
    %p169 = por %p167, %p168
    %p170 = scmp.ne.s32.totalorder %s161, %s162
    %p171 = scmp.eq.s32.totalorder %s20, 0
    %p172 = por %p170, %p171
    %p173 = scmp.ne.s32.totalorder %s161, %s162
    %p174 = scmp.eq.s32.totalorder %s21, 1
    %p175 = por %p173, %p174
    %p177 = scmp.ne.s32.totalorder %s162, %s176
    %p178 = scmp.eq.s32.totalorder %s21, 0
    %p179 = por %p177, %p178
    %s181 = sadd.s32 %s180, 1
    %p184 = scmp.eq.s32.totalorder %s15, 1
    %p185 = scmp.ne.s32.totalorder %s180, %s182
    %p186 = scmp.eq.s32.totalorder %s15, 0
    %p187 = por %p185, %p186
    %p188 = scmp.ne.s32.totalorder %s180, %s182
    %p189 = scmp.eq.s32.totalorder %s20, 1
    %p190 = por %p188, %p189
    %p191 = scmp.ne.s32.totalorder %s182, %s183
    %p192 = scmp.eq.s32.totalorder %s20, 0
    %p193 = por %p191, %p192
    %p194 = scmp.ne.s32.totalorder %s182, %s183
    %p195 = scmp.eq.s32.totalorder %s21, 1
    %p196 = por %p194, %p195
    %p198 = scmp.ne.s32.totalorder %s183, %s197
    %p199 = scmp.eq.s32.totalorder %s21, 0
    %p200 = por %p198, %p199
    %s202 = sadd.s32 %s201, 1
    %p205 = scmp.eq.s32.totalorder %s15, 1
    %p206 = scmp.ne.s32.totalorder %s201, %s203
    %p207 = scmp.eq.s32.totalorder %s15, 0
    %p208 = por %p206, %p207
    %p209 = scmp.ne.s32.totalorder %s201, %s203
    %p210 = scmp.eq.s32.totalorder %s20, 1
    %p211 = por %p209, %p210
    %p212 = scmp.ne.s32.totalorder %s203, %s204
    %p213 = scmp.eq.s32.totalorder %s20, 0
    %p214 = por %p212, %p213
    %p215 = scmp.ne.s32.totalorder %s203, %s204
    %p216 = scmp.eq.s32.totalorder %s21, 1
    %p217 = por %p215, %p216
    %p219 = scmp.ne.s32.totalorder %s204, %s218
    %p220 = scmp.eq.s32.totalorder %s21, 0
    %p221 = por %p219, %p220
    %s222 = ssub.s32 %s15, %s22
    %p223 = scmp.eq.s32.totalorder %s222, 0
    %s225 = sadd.s32 %s224, 1
    %s226 = scalar_select %p223, %s224, %s225
    %p229 = pneg %p223
    %p230 = scmp.eq.s32.totalorder %s15, 1
    %p231 = por %p229, %p230
    %p232 = scmp.ne.s32.totalorder %s224, %s227
    %p233 = scmp.eq.s32.totalorder %s15, 0
    %p234 = por %p232, %p233
    %p235 = scmp.ne.s32.totalorder %s224, %s227
    %p236 = scmp.eq.s32.totalorder %s20, 1
    %p237 = por %p235, %p236
    %p238 = scmp.ne.s32.totalorder %s227, %s228
    %p239 = scmp.eq.s32.totalorder %s20, 0
    %p240 = por %p238, %p239
    %p241 = scmp.ne.s32.totalorder %s227, %s228
    %p242 = scmp.eq.s32.totalorder %s21, 1
    %p243 = por %p241, %p242
    %p245 = scmp.ne.s32.totalorder %s228, %s244
    %p246 = scmp.eq.s32.totalorder %s21, 0
    %p247 = por %p245, %p246
    %p248 = scmp.le.s32.totalorder 1, %s15
    %p249 = scmp.lt.s32.totalorder %s15, 3
    %p250 = pnand %p248, %p249
    %p251 = pneg %p250
    // Predicated region
    $region9: #{vae_forward.1} parent=5 // pred_check
      _
    $region10: #{vae_forward.1} parent=5 // pred_check_branch
      %253 = sbr.rel (%p250) target = $region12
    $region11: #{vae_forward.1} parent=5 // pred_region
      %s254 = ssub.s32 %s15, 1
      // Predicated region
      $region13: #{vae_forward.1} parent=11 // pred_check
        %p255 = pneg %p88
      $region14: #{vae_forward.1} parent=11 // pred_check_branch
        %257 = sbr.rel (%p255) target = $region16
      $region15: #{vae_forward.1} parent=11 // pred_region
        _
      $region16: #{vae_forward.1} parent=11 // pred_fallthru
        _
      // Predicated region
      $region17: #{vae_forward.1} parent=11 // pred_check
        %p258 = pneg %p109
      $region18: #{vae_forward.1} parent=11 // pred_check_branch
        %260 = sbr.rel (%p258) target = $region20
      $region19: #{vae_forward.1} parent=11 // pred_region
        _
      $region20: #{vae_forward.1} parent=11 // pred_fallthru
        _
      // Predicated region
      $region21: #{vae_forward.1} parent=11 // pred_check
        %p261 = pneg %p130
      $region22: #{vae_forward.1} parent=11 // pred_check_branch
        %263 = sbr.rel (%p261) target = $region24
      $region23: #{vae_forward.1} parent=11 // pred_region
        _
      $region24: #{vae_forward.1} parent=11 // pred_fallthru
        _
      // Predicated region
      $region25: #{vae_forward.1} parent=11 // pred_check
        %p264 = pneg %p151
      $region26: #{vae_forward.1} parent=11 // pred_check_branch
        %266 = sbr.rel (%p264) target = $region28
      $region27: #{vae_forward.1} parent=11 // pred_region
        _
      $region28: #{vae_forward.1} parent=11 // pred_fallthru
        _
      // Predicated region
      $region29: #{vae_forward.1} parent=11 // pred_check
        %p267 = pneg %p172
      $region30: #{vae_forward.1} parent=11 // pred_check_branch
        %269 = sbr.rel (%p267) target = $region32
      $region31: #{vae_forward.1} parent=11 // pred_region
        _
      $region32: #{vae_forward.1} parent=11 // pred_fallthru
        _
      // Predicated region
      $region33: #{vae_forward.1} parent=11 // pred_check
        %p270 = pneg %p193
      $region34: #{vae_forward.1} parent=11 // pred_check_branch
        %272 = sbr.rel (%p270) target = $region36
      $region35: #{vae_forward.1} parent=11 // pred_region
        _
      $region36: #{vae_forward.1} parent=11 // pred_fallthru
        _
      // Predicated region
      $region37: #{vae_forward.1} parent=11 // pred_check
        %p273 = pneg %p214
      $region38: #{vae_forward.1} parent=11 // pred_check_branch
        %275 = sbr.rel (%p273) target = $region40
      $region39: #{vae_forward.1} parent=11 // pred_region
        _
      $region40: #{vae_forward.1} parent=11 // pred_fallthru
        _
    $region12: #{vae_forward.1} parent=5 // pred_fallthru
      _
    %p276 = scmp.lt.s32.totalorder %s15, 2
    // Predicated region
    $region41: #{vae_forward.1} parent=5 // pred_check
      %p277 = pneg %p276
    $region42: #{vae_forward.1} parent=5 // pred_check_branch
      %279 = sbr.rel (%p277) target = $region44
    $region43: #{vae_forward.1} parent=5 // pred_region
      // Predicated region
      $region45: #{vae_forward.1} parent=43 // pred_check
        %p280 = pneg %p35
      $region46: #{vae_forward.1} parent=43 // pred_check_branch
        %282 = sbr.rel (%p280) target = $region48
      $region47: #{vae_forward.1} parent=43 // pred_region
        %s283 = smul.u32 32, %s15
        %p284 = scmp.lt.s32.totalorder %s283, 63
        %s285 = scalar_select %p284, %s283, 63
        %s286 = smul.addr %s285, 8
        %s287 = scalar_lea.vmem %s0, %s286
        %s288 = smul.u32 32, %s15
      $region48: #{vae_forward.1} parent=43 // pred_fallthru
        _
      // Predicated region
      $region49: #{vae_forward.1} parent=43 // pred_check
        %p289 = pneg %p61
      $region50: #{vae_forward.1} parent=43 // pred_check_branch
        %291 = sbr.rel (%p289) target = $region52
      $region51: #{vae_forward.1} parent=43 // pred_region
        %s292 = smul.u32 32, %s15
        %p293 = scmp.lt.s32.totalorder %s292, 63
        %s294 = scalar_select %p293, %s292, 63
        %s295 = smul.addr %s294, 8
        %s296 = scalar_lea.vmem %s1, %s295
        %s297 = smul.u32 32, %s15
      $region52: #{vae_forward.1} parent=43 // pred_fallthru
        _
    $region44: #{vae_forward.1} parent=5 // pred_fallthru
      _
    %p298 = scmp.le.s32.totalorder 1, %s15
    %p299 = scmp.lt.s32.totalorder %s15, 3
    %p300 = pnand %p298, %p299
    %p301 = pneg %p300
    // Predicated region
    $region53: #{vae_forward.1} parent=5 // pred_check
      _
    $region54: #{vae_forward.1} parent=5 // pred_check_branch
      %303 = sbr.rel (%p300) target = $region56
    $region55: #{vae_forward.1} parent=5 // pred_region
      %s304 = ssub.s32 %s15, 1
      %s305 = smul.u32 32, %s20
      %p306 = scmp.lt.s32.totalorder %s305, 63
      %s307 = scalar_select %p306, %s305, 63
      %s308 = smul.addr %s307, 8
      %s309 = scalar_lea.vmem %s0, %s308
      %p310 = pneg %p41
      %p311 = pneg %p38
      %s312 = smul.u32 32, %s20
      %p313 = scmp.lt.s32.totalorder %s312, 63
      %s314 = scalar_select %p313, %s312, 63
      %s315 = smul.addr %s314, 8
      %s316 = scalar_lea.vmem %s1, %s315
      %p317 = pneg %p67
      %p318 = pneg %p64
      %p319 = pneg %p88
      %p320 = pneg %p85
      %p321 = pneg %p109
      %p322 = pneg %p106
      %p323 = pneg %p130
      %p324 = pneg %p127
      %p325 = pneg %p151
      %p326 = pneg %p148
      %p327 = pneg %p172
      %p328 = pneg %p169
      %p329 = pneg %p193
      %p330 = pneg %p190
      %p331 = pneg %p214
      %p332 = pneg %p211
      %p333 = pneg %p240
      %p334 = pneg %p237
      %s335 = smul.u32 32, %s20
      %p336 = scmp.lt.s32.totalorder %s335, 63
      %s337 = scalar_select %p336, %s335, 63
      %s338 = smul.addr %s337, 8
      %s339 = scalar_lea.vmem %s9, %s338
      %s340 = smul.u32 32, %s20
      %p341 = scmp.lt.s32.totalorder %s340, 63
      %s342 = scalar_select %p341, %s340, 63
      %s343 = smul.addr %s342, 8
      %s344 = scalar_lea.vmem %s0, %s343
      %s345 = smul.u32 32, %s20
      %s346 = smul.u32 32, %s20
      %p347 = scmp.lt.s32.totalorder %s346, 63
      %s348 = scalar_select %p347, %s346, 63
      %s349 = smul.addr %s348, 8
      %s350 = scalar_lea.vmem %s1, %s349
      %s351 = smul.u32 32, %s20
      %s352 = smul.u32 32, %s20
      %p353 = scmp.lt.s32.totalorder %s352, 63
      %s354 = scalar_select %p353, %s352, 63
      %s355 = smul.addr %s354, 8
      %s356 = scalar_lea.vmem %s9, %s355
      %s357 = smul.u32 32, %s20
      %v358 = vld [vmem:[%s344] sm:$0xff]
      %v359 = vld [vmem:[%s344 + $0x8] sm:$0xff]
      %v360 = vld [vmem:[%s344 + $0x10] sm:$0xff]
      %v361 = vld [vmem:[%s344 + $0x18] sm:$0xff]
      %v362 = vld [vmem:[%s344 + $0x20] sm:$0xff]
      %v363 = vld [vmem:[%s344 + $0x28] sm:$0xff]
      %v364 = vld [vmem:[%s344 + $0x30] sm:$0xff]
      %v365 = vld [vmem:[%s344 + $0x38] sm:$0xff]
      %v366 = vld [vmem:[%s344 + $0x40] sm:$0xff]
      %v367 = vld [vmem:[%s344 + $0x48] sm:$0xff]
      %v368 = vld [vmem:[%s344 + $0x50] sm:$0xff]
      %v369 = vld [vmem:[%s344 + $0x58] sm:$0xff]
      %v370 = vld [vmem:[%s344 + $0x60] sm:$0xff]
      %v371 = vld [vmem:[%s344 + $0x68] sm:$0xff]
      %v372 = vld [vmem:[%s344 + $0x70] sm:$0xff]
      %v373 = vld [vmem:[%s344 + $0x78] sm:$0xff]
      %v374 = vld [vmem:[%s344 + $0x80] sm:$0xff]
      %v375 = vld [vmem:[%s344 + $0x88] sm:$0xff]
      %v376 = vld [vmem:[%s344 + $0x90] sm:$0xff]
      %v377 = vld [vmem:[%s344 + $0x98] sm:$0xff]
      %v378 = vld [vmem:[%s344 + $0xa0] sm:$0xff]
      %v379 = vld [vmem:[%s344 + $0xa8] sm:$0xff]
      %v380 = vld [vmem:[%s344 + $0xb0] sm:$0xff]
      %v381 = vld [vmem:[%s344 + $0xb8] sm:$0xff]
      %v382 = vld [vmem:[%s344 + $0xc0] sm:$0xff]
      %v383 = vld [vmem:[%s344 + $0xc8] sm:$0xff]
      %v384 = vld [vmem:[%s344 + $0xd0] sm:$0xff]
      %v385 = vld [vmem:[%s344 + $0xd8] sm:$0xff]
      %v386 = vld [vmem:[%s344 + $0xe0] sm:$0xff]
      %v387 = vld [vmem:[%s344 + $0xe8] sm:$0xff]
      %v388 = vld [vmem:[%s344 + $0xf0] sm:$0xff]
      %v389 = vld [vmem:[%s344 + $0xf8] sm:$0xff]
      %v390 = vld [vmem:[%s350] sm:$0xff]
      %v391 = vld [vmem:[%s350 + $0x8] sm:$0xff]
      %v392 = vld [vmem:[%s350 + $0x10] sm:$0xff]
      %v393 = vld [vmem:[%s350 + $0x18] sm:$0xff]
      %v394 = vld [vmem:[%s350 + $0x20] sm:$0xff]
      %v395 = vld [vmem:[%s350 + $0x28] sm:$0xff]
      %v396 = vld [vmem:[%s350 + $0x30] sm:$0xff]
      %v397 = vld [vmem:[%s350 + $0x38] sm:$0xff]
      %v398 = vld [vmem:[%s350 + $0x40] sm:$0xff]
      %v399 = vld [vmem:[%s350 + $0x48] sm:$0xff]
      %v400 = vld [vmem:[%s350 + $0x50] sm:$0xff]
      %v401 = vld [vmem:[%s350 + $0x58] sm:$0xff]
      %v402 = vld [vmem:[%s350 + $0x60] sm:$0xff]
      %v403 = vld [vmem:[%s350 + $0x68] sm:$0xff]
      %v404 = vld [vmem:[%s350 + $0x70] sm:$0xff]
      %v405 = vld [vmem:[%s350 + $0x78] sm:$0xff]
      %v406 = vld [vmem:[%s350 + $0x80] sm:$0xff]
      %v407 = vld [vmem:[%s350 + $0x88] sm:$0xff]
      %v408 = vld [vmem:[%s350 + $0x90] sm:$0xff]
      %v409 = vld [vmem:[%s350 + $0x98] sm:$0xff]
      %v410 = vld [vmem:[%s350 + $0xa0] sm:$0xff]
      %v411 = vld [vmem:[%s350 + $0xa8] sm:$0xff]
      %v412 = vld [vmem:[%s350 + $0xb0] sm:$0xff]
      %v413 = vld [vmem:[%s350 + $0xb8] sm:$0xff]
      %v414 = vld [vmem:[%s350 + $0xc0] sm:$0xff]
      %v415 = vld [vmem:[%s350 + $0xc8] sm:$0xff]
      %v416 = vld [vmem:[%s350 + $0xd0] sm:$0xff]
      %v417 = vld [vmem:[%s350 + $0xd8] sm:$0xff]
      %v418 = vld [vmem:[%s350 + $0xe0] sm:$0xff]
      %v419 = vld [vmem:[%s350 + $0xe8] sm:$0xff]
      %v420 = vld [vmem:[%s350 + $0xf0] sm:$0xff]
      %v421 = vld [vmem:[%s350 + $0xf8] sm:$0xff]
      %v422 = vld [vmem:[%s2] sm:$0xff]
      %v423 = vld [vmem:[%s2 + $0x8] sm:$0xff]
      %v424 = vld [vmem:[%s3] sm:$0x1]
      %v426 = vperm.slane %v424, 0
      %vm428 = vcmask 130048
      %v430 = vsel %vm428, %v358, 0
      %v433 = vsel %vm428, %v359, 0
      %v436 = vsel %vm428, %v360, 0
      %v439 = vsel %vm428, %v361, 0
      %v442 = vsel %vm428, %v362, 0
      %v445 = vsel %vm428, %v363, 0
      %v448 = vsel %vm428, %v364, 0
      %v451 = vsel %vm428, %v365, 0
      %v454 = vsel %vm428, %v366, 0
      %v457 = vsel %vm428, %v367, 0
      %v460 = vsel %vm428, %v368, 0
      %v463 = vsel %vm428, %v369, 0
      %v466 = vsel %vm428, %v370, 0
      %v469 = vsel %vm428, %v371, 0
      %v472 = vsel %vm428, %v372, 0
      %v475 = vsel %vm428, %v373, 0
      %v478 = vsel %vm428, %v374, 0
      %v481 = vsel %vm428, %v375, 0
      %v484 = vsel %vm428, %v376, 0
      %v487 = vsel %vm428, %v377, 0
      %v490 = vsel %vm428, %v378, 0
      %v493 = vsel %vm428, %v379, 0
      %v496 = vsel %vm428, %v380, 0
      %v499 = vsel %vm428, %v381, 0
      %v502 = vsel %vm428, %v382, 0
      %v505 = vsel %vm428, %v383, 0
      %v508 = vsel %vm428, %v384, 0
      %v511 = vsel %vm428, %v385, 0
      %v514 = vsel %vm428, %v386, 0
      %v517 = vsel %vm428, %v387, 0
      %v520 = vsel %vm428, %v388, 0
      %v523 = vsel %vm428, %v389, 0
      %525 = vmatpush.msra.mxu0 0.0
      %526 = vmatpush.msra.mxu0 0.0
      %527 = vmatpush.msra.mxu0 0.0
      %528 = vmatpush.msra.mxu0 0.0
      %529 = vmatpush.msra.mxu0 0.0
      %530 = vmatpush.msra.mxu0 0.0
      %531 = vmatpush.msra.mxu0 0.0
      %532 = vmatpush.msra.mxu0 0.0
      %533 = vmatpush.msra.mxu0 0.0
      %534 = vmatpush.msra.mxu0 0.0
      %535 = vmatpush.msra.mxu0 0.0
      %536 = vmatpush.msra.mxu0 0.0
      %537 = vmatpush.msra.mxu0 0.0
      %538 = vmatpush.msra.mxu0 0.0
      %539 = vmatpush.msra.mxu0 %v423
      %540 = vmatpush.msra.mxu0 %v422
      %541 = vmatmul.f32.gmra.mxu0 %v430
      %v542 = vpop.f32.mrf.mxu0
      %v543 = vadd.f32 %v426, %v542
      %544 = vmatmul.f32.gmra.mxu0 %v433
      %v545 = vpop.f32.mrf.mxu0
      %v546 = vadd.f32 %v426, %v545
      %547 = vmatmul.f32.gmra.mxu0 %v436
      %v548 = vpop.f32.mrf.mxu0
      %v549 = vadd.f32 %v426, %v548
      %550 = vmatmul.f32.gmra.mxu0 %v439
      %v551 = vpop.f32.mrf.mxu0
      %v552 = vadd.f32 %v426, %v551
      %553 = vmatmul.f32.gmra.mxu0 %v442
      %v554 = vpop.f32.mrf.mxu0
      %v555 = vadd.f32 %v426, %v554
      %556 = vmatmul.f32.gmra.mxu0 %v445
      %v557 = vpop.f32.mrf.mxu0
      %v558 = vadd.f32 %v426, %v557
      %559 = vmatmul.f32.gmra.mxu0 %v448
      %v560 = vpop.f32.mrf.mxu0
      %v561 = vadd.f32 %v426, %v560
      %562 = vmatmul.f32.gmra.mxu0 %v451
      %v563 = vpop.f32.mrf.mxu0
      %v564 = vadd.f32 %v426, %v563
      %565 = vmatmul.f32.gmra.mxu0 %v454
      %v566 = vpop.f32.mrf.mxu0
      %v567 = vadd.f32 %v426, %v566
      %568 = vmatmul.f32.gmra.mxu0 %v457
      %v569 = vpop.f32.mrf.mxu0
      %v570 = vadd.f32 %v426, %v569
      %571 = vmatmul.f32.gmra.mxu0 %v460
      %v572 = vpop.f32.mrf.mxu0
      %v573 = vadd.f32 %v426, %v572
      %574 = vmatmul.f32.gmra.mxu0 %v463
      %v575 = vpop.f32.mrf.mxu0
      %v576 = vadd.f32 %v426, %v575
      %577 = vmatmul.f32.gmra.mxu0 %v466
      %v578 = vpop.f32.mrf.mxu0
      %v579 = vadd.f32 %v426, %v578
      %580 = vmatmul.f32.gmra.mxu0 %v469
      %v581 = vpop.f32.mrf.mxu0
      %v582 = vadd.f32 %v426, %v581
      %583 = vmatmul.f32.gmra.mxu0 %v472
      %v584 = vpop.f32.mrf.mxu0
      %v585 = vadd.f32 %v426, %v584
      %586 = vmatmul.f32.gmra.mxu0 %v475
      %v587 = vpop.f32.mrf.mxu0
      %v588 = vadd.f32 %v426, %v587
      %589 = vmatmul.f32.gmra.mxu0 %v478
      %v590 = vpop.f32.mrf.mxu0
      %v591 = vadd.f32 %v426, %v590
      %592 = vmatmul.f32.gmra.mxu0 %v481
      %v593 = vpop.f32.mrf.mxu0
      %v594 = vadd.f32 %v426, %v593
      %595 = vmatmul.f32.gmra.mxu0 %v484
      %v596 = vpop.f32.mrf.mxu0
      %v597 = vadd.f32 %v426, %v596
      %598 = vmatmul.f32.gmra.mxu0 %v487
      %v599 = vpop.f32.mrf.mxu0
      %v600 = vadd.f32 %v426, %v599
      %601 = vmatmul.f32.gmra.mxu0 %v490
      %v602 = vpop.f32.mrf.mxu0
      %v603 = vadd.f32 %v426, %v602
      %604 = vmatmul.f32.gmra.mxu0 %v493
      %v605 = vpop.f32.mrf.mxu0
      %v606 = vadd.f32 %v426, %v605
      %607 = vmatmul.f32.gmra.mxu0 %v496
      %v608 = vpop.f32.mrf.mxu0
      %v609 = vadd.f32 %v426, %v608
      %610 = vmatmul.f32.gmra.mxu0 %v499
      %v611 = vpop.f32.mrf.mxu0
      %v612 = vadd.f32 %v426, %v611
      %613 = vmatmul.f32.gmra.mxu0 %v502
      %v614 = vpop.f32.mrf.mxu0
      %v615 = vadd.f32 %v426, %v614
      %616 = vmatmul.f32.gmra.mxu0 %v505
      %v617 = vpop.f32.mrf.mxu0
      %v618 = vadd.f32 %v426, %v617
      %619 = vmatmul.f32.gmra.mxu0 %v508
      %v620 = vpop.f32.mrf.mxu0
      %v621 = vadd.f32 %v426, %v620
      %622 = vmatmul.f32.gmra.mxu0 %v511
      %v623 = vpop.f32.mrf.mxu0
      %v624 = vadd.f32 %v426, %v623
      %625 = vmatmul.f32.gmra.mxu0 %v514
      %v626 = vpop.f32.mrf.mxu0
      %v627 = vadd.f32 %v426, %v626
      %628 = vmatmul.f32.gmra.mxu0 %v517
      %v629 = vpop.f32.mrf.mxu0
      %v630 = vadd.f32 %v426, %v629
      %631 = vmatmul.f32.gmra.mxu0 %v520
      %v632 = vpop.f32.mrf.mxu0
      %v633 = vadd.f32 %v426, %v632
      %634 = vmatmul.f32.gmra.mxu0 %v523
      %v635 = vpop.f32.mrf.mxu0
      %v636 = vadd.f32 %v426, %v635
      %637 = vdwg.mxu0
      %v638 = vmax.f32 %v543, 0.0
      %v639 = vmax.f32 %v546, 0.0
      %v640 = vmax.f32 %v549, 0.0
      %v641 = vmax.f32 %v552, 0.0
      %v642 = vmax.f32 %v555, 0.0
      %v643 = vmax.f32 %v558, 0.0
      %v644 = vmax.f32 %v561, 0.0
      %v645 = vmax.f32 %v564, 0.0
      %v646 = vmax.f32 %v567, 0.0
      %v647 = vmax.f32 %v570, 0.0
      %v648 = vmax.f32 %v573, 0.0
      %v649 = vmax.f32 %v576, 0.0
      %v650 = vmax.f32 %v579, 0.0
      %v651 = vmax.f32 %v582, 0.0
      %v652 = vmax.f32 %v585, 0.0
      %v653 = vmax.f32 %v588, 0.0
      %v654 = vmax.f32 %v591, 0.0
      %v655 = vmax.f32 %v594, 0.0
      %v656 = vmax.f32 %v597, 0.0
      %v657 = vmax.f32 %v600, 0.0
      %v658 = vmax.f32 %v603, 0.0
      %v659 = vmax.f32 %v606, 0.0
      %v660 = vmax.f32 %v609, 0.0
      %v661 = vmax.f32 %v612, 0.0
      %v662 = vmax.f32 %v615, 0.0
      %v663 = vmax.f32 %v618, 0.0
      %v664 = vmax.f32 %v621, 0.0
      %v665 = vmax.f32 %v624, 0.0
      %v666 = vmax.f32 %v627, 0.0
      %v667 = vmax.f32 %v630, 0.0
      %v668 = vmax.f32 %v633, 0.0
      %v669 = vmax.f32 %v636, 0.0
      %v670 = vld [vmem:[%s4] sm:$0xff]
      %v671 = vld [vmem:[%s4 + $0x8] sm:$0xff]
      %v672 = vld [vmem:[%s4 + $0x10] sm:$0xff]
      %v673 = vld [vmem:[%s4 + $0x18] sm:$0xff]
      %v674 = vld [vmem:[%s4 + $0x20] sm:$0xff]
      %v675 = vld [vmem:[%s4 + $0x28] sm:$0xff]
      %v676 = vld [vmem:[%s4 + $0x30] sm:$0xff]
      %v677 = vld [vmem:[%s4 + $0x38] sm:$0xff]
      %v678 = vld [vmem:[%s5] sm:$0x1]
      %v680 = vperm.slane %v678, 0
      %vm682 = vcmask 523264
      %v684 = vsel %vm682, %v638, 0
      %v687 = vsel %vm682, %v639, 0
      %v690 = vsel %vm682, %v640, 0
      %v693 = vsel %vm682, %v641, 0
      %v696 = vsel %vm682, %v642, 0
      %v699 = vsel %vm682, %v643, 0
      %v702 = vsel %vm682, %v644, 0
      %v705 = vsel %vm682, %v645, 0
      %v708 = vsel %vm682, %v646, 0
      %v711 = vsel %vm682, %v647, 0
      %v714 = vsel %vm682, %v648, 0
      %v717 = vsel %vm682, %v649, 0
      %v720 = vsel %vm682, %v650, 0
      %v723 = vsel %vm682, %v651, 0
      %v726 = vsel %vm682, %v652, 0
      %v729 = vsel %vm682, %v653, 0
      %v732 = vsel %vm682, %v654, 0
      %v735 = vsel %vm682, %v655, 0
      %v738 = vsel %vm682, %v656, 0
      %v741 = vsel %vm682, %v657, 0
      %v744 = vsel %vm682, %v658, 0
      %v747 = vsel %vm682, %v659, 0
      %v750 = vsel %vm682, %v660, 0
      %v753 = vsel %vm682, %v661, 0
      %v756 = vsel %vm682, %v662, 0
      %v759 = vsel %vm682, %v663, 0
      %v762 = vsel %vm682, %v664, 0
      %v765 = vsel %vm682, %v665, 0
      %v768 = vsel %vm682, %v666, 0
      %v771 = vsel %vm682, %v667, 0
      %v774 = vsel %vm682, %v668, 0
      %v777 = vsel %vm682, %v669, 0
      %779 = vmatpush.msra.mxu0 0.0
      %780 = vmatpush.msra.mxu0 0.0
      %781 = vmatpush.msra.mxu0 0.0
      %782 = vmatpush.msra.mxu0 0.0
      %783 = vmatpush.msra.mxu0 0.0
      %784 = vmatpush.msra.mxu0 0.0
      %785 = vmatpush.msra.mxu0 0.0
      %786 = vmatpush.msra.mxu0 0.0
      %787 = vmatpush.msra.mxu0 %v677
      %788 = vmatpush.msra.mxu0 %v676
      %789 = vmatpush.msra.mxu0 %v675
      %790 = vmatpush.msra.mxu0 %v674
      %791 = vmatpush.msra.mxu0 %v673
      %792 = vmatpush.msra.mxu0 %v672
      %793 = vmatpush.msra.mxu0 %v671
      %794 = vmatpush.msra.mxu0 %v670
      %795 = vmatmul.f32.gmra.mxu0 %v684
      %v796 = vpop.f32.mrf.mxu0
      %v797 = vadd.f32 %v680, %v796
      %798 = vmatmul.f32.gmra.mxu0 %v687
      %v799 = vpop.f32.mrf.mxu0
      %v800 = vadd.f32 %v680, %v799
      %801 = vmatmul.f32.gmra.mxu0 %v690
      %v802 = vpop.f32.mrf.mxu0
      %v803 = vadd.f32 %v680, %v802
      %804 = vmatmul.f32.gmra.mxu0 %v693
      %v805 = vpop.f32.mrf.mxu0
      %v806 = vadd.f32 %v680, %v805
      %807 = vmatmul.f32.gmra.mxu0 %v696
      %v808 = vpop.f32.mrf.mxu0
      %v809 = vadd.f32 %v680, %v808
      %810 = vmatmul.f32.gmra.mxu0 %v699
      %v811 = vpop.f32.mrf.mxu0
      %v812 = vadd.f32 %v680, %v811
      %813 = vmatmul.f32.gmra.mxu0 %v702
      %v814 = vpop.f32.mrf.mxu0
      %v815 = vadd.f32 %v680, %v814
      %816 = vmatmul.f32.gmra.mxu0 %v705
      %v817 = vpop.f32.mrf.mxu0
      %v818 = vadd.f32 %v680, %v817
      %819 = vmatmul.f32.gmra.mxu0 %v708
      %v820 = vpop.f32.mrf.mxu0
      %v821 = vadd.f32 %v680, %v820
      %822 = vmatmul.f32.gmra.mxu0 %v711
      %v823 = vpop.f32.mrf.mxu0
      %v824 = vadd.f32 %v680, %v823
      %825 = vmatmul.f32.gmra.mxu0 %v714
      %v826 = vpop.f32.mrf.mxu0
      %v827 = vadd.f32 %v680, %v826
      %828 = vmatmul.f32.gmra.mxu0 %v717
      %v829 = vpop.f32.mrf.mxu0
      %v830 = vadd.f32 %v680, %v829
      %831 = vmatmul.f32.gmra.mxu0 %v720
      %v832 = vpop.f32.mrf.mxu0
      %v833 = vadd.f32 %v680, %v832
      %834 = vmatmul.f32.gmra.mxu0 %v723
      %v835 = vpop.f32.mrf.mxu0
      %v836 = vadd.f32 %v680, %v835
      %837 = vmatmul.f32.gmra.mxu0 %v726
      %v838 = vpop.f32.mrf.mxu0
      %v839 = vadd.f32 %v680, %v838
      %840 = vmatmul.f32.gmra.mxu0 %v729
      %v841 = vpop.f32.mrf.mxu0
      %v842 = vadd.f32 %v680, %v841
      %843 = vmatmul.f32.gmra.mxu0 %v732
      %v844 = vpop.f32.mrf.mxu0
      %v845 = vadd.f32 %v680, %v844
      %846 = vmatmul.f32.gmra.mxu0 %v735
      %v847 = vpop.f32.mrf.mxu0
      %v848 = vadd.f32 %v680, %v847
      %849 = vmatmul.f32.gmra.mxu0 %v738
      %v850 = vpop.f32.mrf.mxu0
      %v851 = vadd.f32 %v680, %v850
      %852 = vmatmul.f32.gmra.mxu0 %v741
      %v853 = vpop.f32.mrf.mxu0
      %v854 = vadd.f32 %v680, %v853
      %855 = vmatmul.f32.gmra.mxu0 %v744
      %v856 = vpop.f32.mrf.mxu0
      %v857 = vadd.f32 %v680, %v856
      %858 = vmatmul.f32.gmra.mxu0 %v747
      %v859 = vpop.f32.mrf.mxu0
      %v860 = vadd.f32 %v680, %v859
      %861 = vmatmul.f32.gmra.mxu0 %v750
      %v862 = vpop.f32.mrf.mxu0
      %v863 = vadd.f32 %v680, %v862
      %864 = vmatmul.f32.gmra.mxu0 %v753
      %v865 = vpop.f32.mrf.mxu0
      %v866 = vadd.f32 %v680, %v865
      %867 = vmatmul.f32.gmra.mxu0 %v756
      %v868 = vpop.f32.mrf.mxu0
      %v869 = vadd.f32 %v680, %v868
      %870 = vmatmul.f32.gmra.mxu0 %v759
      %v871 = vpop.f32.mrf.mxu0
      %v872 = vadd.f32 %v680, %v871
      %873 = vmatmul.f32.gmra.mxu0 %v762
      %v874 = vpop.f32.mrf.mxu0
      %v875 = vadd.f32 %v680, %v874
      %876 = vmatmul.f32.gmra.mxu0 %v765
      %v877 = vpop.f32.mrf.mxu0
      %v878 = vadd.f32 %v680, %v877
      %879 = vmatmul.f32.gmra.mxu0 %v768
      %v880 = vpop.f32.mrf.mxu0
      %v881 = vadd.f32 %v680, %v880
      %882 = vmatmul.f32.gmra.mxu0 %v771
      %v883 = vpop.f32.mrf.mxu0
      %v884 = vadd.f32 %v680, %v883
      %885 = vmatmul.f32.gmra.mxu0 %v774
      %v886 = vpop.f32.mrf.mxu0
      %v887 = vadd.f32 %v680, %v886
      %888 = vmatmul.f32.gmra.mxu0 %v777
      %v889 = vpop.f32.mrf.mxu0
      %v890 = vadd.f32 %v680, %v889
      %891 = vdwg.mxu0
      %v892 = vmul.f32 %v797, 0.5
      %v893 = vmul.f32 %v800, 0.5
      %v894 = vmul.f32 %v803, 0.5
      %v895 = vmul.f32 %v806, 0.5
      %v896 = vmul.f32 %v809, 0.5
      %v897 = vmul.f32 %v812, 0.5
      %v898 = vmul.f32 %v815, 0.5
      %v899 = vmul.f32 %v818, 0.5
      %v900 = vmul.f32 %v821, 0.5
      %v901 = vmul.f32 %v824, 0.5
      %v902 = vmul.f32 %v827, 0.5
      %v903 = vmul.f32 %v830, 0.5
      %v904 = vmul.f32 %v833, 0.5
      %v905 = vmul.f32 %v836, 0.5
      %v906 = vmul.f32 %v839, 0.5
      %v907 = vmul.f32 %v842, 0.5
      %v908 = vmul.f32 %v845, 0.5
      %v909 = vmul.f32 %v848, 0.5
      %v910 = vmul.f32 %v851, 0.5
      %v911 = vmul.f32 %v854, 0.5
      %v912 = vmul.f32 %v857, 0.5
      %v913 = vmul.f32 %v860, 0.5
      %v914 = vmul.f32 %v863, 0.5
      %v915 = vmul.f32 %v866, 0.5
      %v916 = vmul.f32 %v869, 0.5
      %v917 = vmul.f32 %v872, 0.5
      %v918 = vmul.f32 %v875, 0.5
      %v919 = vmul.f32 %v878, 0.5
      %v920 = vmul.f32 %v881, 0.5
      %v921 = vmul.f32 %v884, 0.5
      %v922 = vmul.f32 %v887, 0.5
      %v923 = vmul.f32 %v890, 0.5
      %v924 = vmul.f32 %v892, 1.442695
      %v925 = vpow.pop %v924
      %v926 = vmul.f32 %v893, 1.442695
      %v927 = vpow.pop %v926
      %v928 = vmul.f32 %v894, 1.442695
      %v929 = vpow.pop %v928
      %v930 = vmul.f32 %v895, 1.442695
      %v931 = vpow.pop %v930
      %v932 = vmul.f32 %v896, 1.442695
      %v933 = vpow.pop %v932
      %v934 = vmul.f32 %v897, 1.442695
      %v935 = vpow.pop %v934
      %v936 = vmul.f32 %v898, 1.442695
      %v937 = vpow.pop %v936
      %v938 = vmul.f32 %v899, 1.442695
      %v939 = vpow.pop %v938
      %v940 = vmul.f32 %v900, 1.442695
      %v941 = vpow.pop %v940
      %v942 = vmul.f32 %v901, 1.442695
      %v943 = vpow.pop %v942
      %v944 = vmul.f32 %v902, 1.442695
      %v945 = vpow.pop %v944
      %v946 = vmul.f32 %v903, 1.442695
      %v947 = vpow.pop %v946
      %v948 = vmul.f32 %v904, 1.442695
      %v949 = vpow.pop %v948
      %v950 = vmul.f32 %v905, 1.442695
      %v951 = vpow.pop %v950
      %v952 = vmul.f32 %v906, 1.442695
      %v953 = vpow.pop %v952
      %v954 = vmul.f32 %v907, 1.442695
      %v955 = vpow.pop %v954
      %v956 = vmul.f32 %v908, 1.442695
      %v957 = vpow.pop %v956
      %v958 = vmul.f32 %v909, 1.442695
      %v959 = vpow.pop %v958
      %v960 = vmul.f32 %v910, 1.442695
      %v961 = vpow.pop %v960
      %v962 = vmul.f32 %v911, 1.442695
      %v963 = vpow.pop %v962
      %v964 = vmul.f32 %v912, 1.442695
      %v965 = vpow.pop %v964
      %v966 = vmul.f32 %v913, 1.442695
      %v967 = vpow.pop %v966
      %v968 = vmul.f32 %v914, 1.442695
      %v969 = vpow.pop %v968
      %v970 = vmul.f32 %v915, 1.442695
      %v971 = vpow.pop %v970
      %v972 = vmul.f32 %v916, 1.442695
      %v973 = vpow.pop %v972
      %v974 = vmul.f32 %v917, 1.442695
      %v975 = vpow.pop %v974
      %v976 = vmul.f32 %v918, 1.442695
      %v977 = vpow.pop %v976
      %v978 = vmul.f32 %v919, 1.442695
      %v979 = vpow.pop %v978
      %v980 = vmul.f32 %v920, 1.442695
      %v981 = vpow.pop %v980
      %v982 = vmul.f32 %v921, 1.442695
      %v983 = vpow.pop %v982
      %v984 = vmul.f32 %v922, 1.442695
      %v985 = vpow.pop %v984
      %v986 = vmul.f32 %v923, 1.442695
      %v987 = vpow.pop %v986
      %1020 = vrot.lane.b32.xlu0 %v925, 96
      %v1021 = vpop.permute.xlu0 %1020
      %1022 = vrot.lane.b32.xlu0 %v927, 96
      %v1023 = vpop.permute.xlu0 %1022
      %1024 = vrot.lane.b32.xlu0 %v929, 96
      %v1025 = vpop.permute.xlu0 %1024
      %1026 = vrot.lane.b32.xlu0 %v931, 96
      %v1027 = vpop.permute.xlu0 %1026
      %1028 = vrot.lane.b32.xlu0 %v933, 96
      %v1029 = vpop.permute.xlu0 %1028
      %1030 = vrot.lane.b32.xlu0 %v935, 96
      %v1031 = vpop.permute.xlu0 %1030
      %1032 = vrot.lane.b32.xlu0 %v937, 96
      %v1033 = vpop.permute.xlu0 %1032
      %1034 = vrot.lane.b32.xlu0 %v939, 96
      %v1035 = vpop.permute.xlu0 %1034
      %1036 = vrot.lane.b32.xlu0 %v941, 96
      %v1037 = vpop.permute.xlu0 %1036
      %1038 = vrot.lane.b32.xlu0 %v943, 96
      %v1039 = vpop.permute.xlu0 %1038
      %1040 = vrot.lane.b32.xlu0 %v945, 96
      %v1041 = vpop.permute.xlu0 %1040
      %1042 = vrot.lane.b32.xlu0 %v947, 96
      %v1043 = vpop.permute.xlu0 %1042
      %1044 = vrot.lane.b32.xlu0 %v949, 96
      %v1045 = vpop.permute.xlu0 %1044
      %1046 = vrot.lane.b32.xlu0 %v951, 96
      %v1047 = vpop.permute.xlu0 %1046
      %1048 = vrot.lane.b32.xlu0 %v953, 96
      %v1049 = vpop.permute.xlu0 %1048
      %1050 = vrot.lane.b32.xlu0 %v955, 96
      %v1051 = vpop.permute.xlu0 %1050
      %1052 = vrot.lane.b32.xlu0 %v957, 96
      %v1053 = vpop.permute.xlu0 %1052
      %1054 = vrot.lane.b32.xlu0 %v959, 96
      %v1055 = vpop.permute.xlu0 %1054
      %1056 = vrot.lane.b32.xlu0 %v961, 96
      %v1057 = vpop.permute.xlu0 %1056
      %1058 = vrot.lane.b32.xlu0 %v963, 96
      %v1059 = vpop.permute.xlu0 %1058
      %1060 = vrot.lane.b32.xlu0 %v965, 96
      %v1061 = vpop.permute.xlu0 %1060
      %1062 = vrot.lane.b32.xlu0 %v967, 96
      %v1063 = vpop.permute.xlu0 %1062
      %1064 = vrot.lane.b32.xlu0 %v969, 96
      %v1065 = vpop.permute.xlu0 %1064
      %1066 = vrot.lane.b32.xlu0 %v971, 96
      %v1067 = vpop.permute.xlu0 %1066
      %1068 = vrot.lane.b32.xlu0 %v973, 96
      %v1069 = vpop.permute.xlu0 %1068
      %1070 = vrot.lane.b32.xlu0 %v975, 96
      %v1071 = vpop.permute.xlu0 %1070
      %1072 = vrot.lane.b32.xlu0 %v977, 96
      %v1073 = vpop.permute.xlu0 %1072
      %1074 = vrot.lane.b32.xlu0 %v979, 96
      %v1075 = vpop.permute.xlu0 %1074
      %1076 = vrot.lane.b32.xlu0 %v981, 96
      %v1077 = vpop.permute.xlu0 %1076
      %1078 = vrot.lane.b32.xlu0 %v983, 96
      %v1079 = vpop.permute.xlu0 %1078
      %1080 = vrot.lane.b32.xlu0 %v985, 96
      %v1081 = vpop.permute.xlu0 %1080
      %1082 = vrot.lane.b32.xlu0 %v987, 96
      %v1083 = vpop.permute.xlu0 %1082
      %v1116 = vmul.f32 %v390, %v1021
      %v1117 = vmul.f32 %v391, %v1023
      %v1118 = vmul.f32 %v392, %v1025
      %v1119 = vmul.f32 %v393, %v1027
      %v1120 = vmul.f32 %v394, %v1029
      %v1121 = vmul.f32 %v395, %v1031
      %v1122 = vmul.f32 %v396, %v1033
      %v1123 = vmul.f32 %v397, %v1035
      %v1124 = vmul.f32 %v398, %v1037
      %v1125 = vmul.f32 %v399, %v1039
      %v1126 = vmul.f32 %v400, %v1041
      %v1127 = vmul.f32 %v401, %v1043
      %v1128 = vmul.f32 %v402, %v1045
      %v1129 = vmul.f32 %v403, %v1047
      %v1130 = vmul.f32 %v404, %v1049
      %v1131 = vmul.f32 %v405, %v1051
      %v1132 = vmul.f32 %v406, %v1053
      %v1133 = vmul.f32 %v407, %v1055
      %v1134 = vmul.f32 %v408, %v1057
      %v1135 = vmul.f32 %v409, %v1059
      %v1136 = vmul.f32 %v410, %v1061
      %v1137 = vmul.f32 %v411, %v1063
      %v1138 = vmul.f32 %v412, %v1065
      %v1139 = vmul.f32 %v413, %v1067
      %v1140 = vmul.f32 %v414, %v1069
      %v1141 = vmul.f32 %v415, %v1071
      %v1142 = vmul.f32 %v416, %v1073
      %v1143 = vmul.f32 %v417, %v1075
      %v1144 = vmul.f32 %v418, %v1077
      %v1145 = vmul.f32 %v419, %v1079
      %v1146 = vmul.f32 %v420, %v1081
      %v1147 = vmul.f32 %v421, %v1083
      %v1148 = vadd.f32 %v1116, %v797
      %v1149 = vadd.f32 %v1117, %v800
      %v1150 = vadd.f32 %v1118, %v803
      %v1151 = vadd.f32 %v1119, %v806
      %v1152 = vadd.f32 %v1120, %v809
      %v1153 = vadd.f32 %v1121, %v812
      %v1154 = vadd.f32 %v1122, %v815
      %v1155 = vadd.f32 %v1123, %v818
      %v1156 = vadd.f32 %v1124, %v821
      %v1157 = vadd.f32 %v1125, %v824
      %v1158 = vadd.f32 %v1126, %v827
      %v1159 = vadd.f32 %v1127, %v830
      %v1160 = vadd.f32 %v1128, %v833
      %v1161 = vadd.f32 %v1129, %v836
      %v1162 = vadd.f32 %v1130, %v839
      %v1163 = vadd.f32 %v1131, %v842
      %v1164 = vadd.f32 %v1132, %v845
      %v1165 = vadd.f32 %v1133, %v848
      %v1166 = vadd.f32 %v1134, %v851
      %v1167 = vadd.f32 %v1135, %v854
      %v1168 = vadd.f32 %v1136, %v857
      %v1169 = vadd.f32 %v1137, %v860
      %v1170 = vadd.f32 %v1138, %v863
      %v1171 = vadd.f32 %v1139, %v866
      %v1172 = vadd.f32 %v1140, %v869
      %v1173 = vadd.f32 %v1141, %v872
      %v1174 = vadd.f32 %v1142, %v875
      %v1175 = vadd.f32 %v1143, %v878
      %v1176 = vadd.f32 %v1144, %v881
      %v1177 = vadd.f32 %v1145, %v884
      %v1178 = vadd.f32 %v1146, %v887
      %v1179 = vadd.f32 %v1147, %v890
      %v1180 = vld [vmem:[%s6] sm:$0xff]
      %v1181 = vld [vmem:[%s6 + $0x8] sm:$0xff]
      %v1182 = vld [vmem:[%s6 + $0x10] sm:$0xff]
      %v1183 = vld [vmem:[%s6 + $0x18] sm:$0xff]
      %v1184 = vld [vmem:[%s7] sm:$0x1]
      %v1186 = vperm.slane %v1184, 0
      %vm1188 = vcmask 261120
      %v1190 = vsel %vm1188, %v1148, 0
      %v1193 = vsel %vm1188, %v1149, 0
      %v1196 = vsel %vm1188, %v1150, 0
      %v1199 = vsel %vm1188, %v1151, 0
      %v1202 = vsel %vm1188, %v1152, 0
      %v1205 = vsel %vm1188, %v1153, 0
      %v1208 = vsel %vm1188, %v1154, 0
      %v1211 = vsel %vm1188, %v1155, 0
      %v1214 = vsel %vm1188, %v1156, 0
      %v1217 = vsel %vm1188, %v1157, 0
      %v1220 = vsel %vm1188, %v1158, 0
      %v1223 = vsel %vm1188, %v1159, 0
      %v1226 = vsel %vm1188, %v1160, 0
      %v1229 = vsel %vm1188, %v1161, 0
      %v1232 = vsel %vm1188, %v1162, 0
      %v1235 = vsel %vm1188, %v1163, 0
      %v1238 = vsel %vm1188, %v1164, 0
      %v1241 = vsel %vm1188, %v1165, 0
      %v1244 = vsel %vm1188, %v1166, 0
      %v1247 = vsel %vm1188, %v1167, 0
      %v1250 = vsel %vm1188, %v1168, 0
      %v1253 = vsel %vm1188, %v1169, 0
      %v1256 = vsel %vm1188, %v1170, 0
      %v1259 = vsel %vm1188, %v1171, 0
      %v1262 = vsel %vm1188, %v1172, 0
      %v1265 = vsel %vm1188, %v1173, 0
      %v1268 = vsel %vm1188, %v1174, 0
      %v1271 = vsel %vm1188, %v1175, 0
      %v1274 = vsel %vm1188, %v1176, 0
      %v1277 = vsel %vm1188, %v1177, 0
      %v1280 = vsel %vm1188, %v1178, 0
      %v1283 = vsel %vm1188, %v1179, 0
      %1285 = vmatpush.msra.mxu0 0.0
      %1286 = vmatpush.msra.mxu0 0.0
      %1287 = vmatpush.msra.mxu0 0.0
      %1288 = vmatpush.msra.mxu0 0.0
      %1289 = vmatpush.msra.mxu0 0.0
      %1290 = vmatpush.msra.mxu0 0.0
      %1291 = vmatpush.msra.mxu0 0.0
      %1292 = vmatpush.msra.mxu0 0.0
      %1293 = vmatpush.msra.mxu0 0.0
      %1294 = vmatpush.msra.mxu0 0.0
      %1295 = vmatpush.msra.mxu0 0.0
      %1296 = vmatpush.msra.mxu0 0.0
      %1297 = vmatpush.msra.mxu0 %v1183
      %1298 = vmatpush.msra.mxu0 %v1182
      %1299 = vmatpush.msra.mxu0 %v1181
      %1300 = vmatpush.msra.mxu0 %v1180
      %1301 = vmatmul.f32.gmra.mxu0 %v1190
      %v1302 = vpop.f32.mrf.mxu0
      %v1303 = vadd.f32 %v1186, %v1302
      %1304 = vmatmul.f32.gmra.mxu0 %v1193
      %v1305 = vpop.f32.mrf.mxu0
      %v1306 = vadd.f32 %v1186, %v1305
      %1307 = vmatmul.f32.gmra.mxu0 %v1196
      %v1308 = vpop.f32.mrf.mxu0
      %v1309 = vadd.f32 %v1186, %v1308
      %1310 = vmatmul.f32.gmra.mxu0 %v1199
      %v1311 = vpop.f32.mrf.mxu0
      %v1312 = vadd.f32 %v1186, %v1311
      %1313 = vmatmul.f32.gmra.mxu0 %v1202
      %v1314 = vpop.f32.mrf.mxu0
      %v1315 = vadd.f32 %v1186, %v1314
      %1316 = vmatmul.f32.gmra.mxu0 %v1205
      %v1317 = vpop.f32.mrf.mxu0
      %v1318 = vadd.f32 %v1186, %v1317
      %1319 = vmatmul.f32.gmra.mxu0 %v1208
      %v1320 = vpop.f32.mrf.mxu0
      %v1321 = vadd.f32 %v1186, %v1320
      %1322 = vmatmul.f32.gmra.mxu0 %v1211
      %v1323 = vpop.f32.mrf.mxu0
      %v1324 = vadd.f32 %v1186, %v1323
      %1325 = vmatmul.f32.gmra.mxu0 %v1214
      %v1326 = vpop.f32.mrf.mxu0
      %v1327 = vadd.f32 %v1186, %v1326
      %1328 = vmatmul.f32.gmra.mxu0 %v1217
      %v1329 = vpop.f32.mrf.mxu0
      %v1330 = vadd.f32 %v1186, %v1329
      %1331 = vmatmul.f32.gmra.mxu0 %v1220
      %v1332 = vpop.f32.mrf.mxu0
      %v1333 = vadd.f32 %v1186, %v1332
      %1334 = vmatmul.f32.gmra.mxu0 %v1223
      %v1335 = vpop.f32.mrf.mxu0
      %v1336 = vadd.f32 %v1186, %v1335
      %1337 = vmatmul.f32.gmra.mxu0 %v1226
      %v1338 = vpop.f32.mrf.mxu0
      %v1339 = vadd.f32 %v1186, %v1338
      %1340 = vmatmul.f32.gmra.mxu0 %v1229
      %v1341 = vpop.f32.mrf.mxu0
      %v1342 = vadd.f32 %v1186, %v1341
      %1343 = vmatmul.f32.gmra.mxu0 %v1232
      %v1344 = vpop.f32.mrf.mxu0
      %v1345 = vadd.f32 %v1186, %v1344
      %1346 = vmatmul.f32.gmra.mxu0 %v1235
      %v1347 = vpop.f32.mrf.mxu0
      %v1348 = vadd.f32 %v1186, %v1347
      %1349 = vmatmul.f32.gmra.mxu0 %v1238
      %v1350 = vpop.f32.mrf.mxu0
      %v1351 = vadd.f32 %v1186, %v1350
      %1352 = vmatmul.f32.gmra.mxu0 %v1241
      %v1353 = vpop.f32.mrf.mxu0
      %v1354 = vadd.f32 %v1186, %v1353
      %1355 = vmatmul.f32.gmra.mxu0 %v1244
      %v1356 = vpop.f32.mrf.mxu0
      %v1357 = vadd.f32 %v1186, %v1356
      %1358 = vmatmul.f32.gmra.mxu0 %v1247
      %v1359 = vpop.f32.mrf.mxu0
      %v1360 = vadd.f32 %v1186, %v1359
      %1361 = vmatmul.f32.gmra.mxu0 %v1250
      %v1362 = vpop.f32.mrf.mxu0
      %v1363 = vadd.f32 %v1186, %v1362
      %1364 = vmatmul.f32.gmra.mxu0 %v1253
      %v1365 = vpop.f32.mrf.mxu0
      %v1366 = vadd.f32 %v1186, %v1365
      %1367 = vmatmul.f32.gmra.mxu0 %v1256
      %v1368 = vpop.f32.mrf.mxu0
      %v1369 = vadd.f32 %v1186, %v1368
      %1370 = vmatmul.f32.gmra.mxu0 %v1259
      %v1371 = vpop.f32.mrf.mxu0
      %v1372 = vadd.f32 %v1186, %v1371
      %1373 = vmatmul.f32.gmra.mxu0 %v1262
      %v1374 = vpop.f32.mrf.mxu0
      %v1375 = vadd.f32 %v1186, %v1374
      %1376 = vmatmul.f32.gmra.mxu0 %v1265
      %v1377 = vpop.f32.mrf.mxu0
      %v1378 = vadd.f32 %v1186, %v1377
      %1379 = vmatmul.f32.gmra.mxu0 %v1268
      %v1380 = vpop.f32.mrf.mxu0
      %v1381 = vadd.f32 %v1186, %v1380
      %1382 = vmatmul.f32.gmra.mxu0 %v1271
      %v1383 = vpop.f32.mrf.mxu0
      %v1384 = vadd.f32 %v1186, %v1383
      %1385 = vmatmul.f32.gmra.mxu0 %v1274
      %v1386 = vpop.f32.mrf.mxu0
      %v1387 = vadd.f32 %v1186, %v1386
      %1388 = vmatmul.f32.gmra.mxu0 %v1277
      %v1389 = vpop.f32.mrf.mxu0
      %v1390 = vadd.f32 %v1186, %v1389
      %1391 = vmatmul.f32.gmra.mxu0 %v1280
      %v1392 = vpop.f32.mrf.mxu0
      %v1393 = vadd.f32 %v1186, %v1392
      %1394 = vmatmul.f32.gmra.mxu0 %v1283
      %v1395 = vpop.f32.mrf.mxu0
      %v1396 = vadd.f32 %v1186, %v1395
      %1397 = vdwg.mxu0
      %v1398 = vmax.f32 %v1303, 0.0
      %v1399 = vmax.f32 %v1306, 0.0
      %v1400 = vmax.f32 %v1309, 0.0
      %v1401 = vmax.f32 %v1312, 0.0
      %v1402 = vmax.f32 %v1315, 0.0
      %v1403 = vmax.f32 %v1318, 0.0
      %v1404 = vmax.f32 %v1321, 0.0
      %v1405 = vmax.f32 %v1324, 0.0
      %v1406 = vmax.f32 %v1327, 0.0
      %v1407 = vmax.f32 %v1330, 0.0
      %v1408 = vmax.f32 %v1333, 0.0
      %v1409 = vmax.f32 %v1336, 0.0
      %v1410 = vmax.f32 %v1339, 0.0
      %v1411 = vmax.f32 %v1342, 0.0
      %v1412 = vmax.f32 %v1345, 0.0
      %v1413 = vmax.f32 %v1348, 0.0
      %v1414 = vmax.f32 %v1351, 0.0
      %v1415 = vmax.f32 %v1354, 0.0
      %v1416 = vmax.f32 %v1357, 0.0
      %v1417 = vmax.f32 %v1360, 0.0
      %v1418 = vmax.f32 %v1363, 0.0
      %v1419 = vmax.f32 %v1366, 0.0
      %v1420 = vmax.f32 %v1369, 0.0
      %v1421 = vmax.f32 %v1372, 0.0
      %v1422 = vmax.f32 %v1375, 0.0
      %v1423 = vmax.f32 %v1378, 0.0
      %v1424 = vmax.f32 %v1381, 0.0
      %v1425 = vmax.f32 %v1384, 0.0
      %v1426 = vmax.f32 %v1387, 0.0
      %v1427 = vmax.f32 %v1390, 0.0
      %v1428 = vmax.f32 %v1393, 0.0
      %v1429 = vmax.f32 %v1396, 0.0
      %v1430 = vld [vmem:[%s8] sm:$0xff]
      %v1431 = vld [vmem:[%s8 + $0x8] sm:$0xff]
      %v1432 = vld [vmem:[%s8 + $0x10] sm:$0xff]
      %v1433 = vld [vmem:[%s8 + $0x18] sm:$0xff]
      %v1434 = vld [vmem:[%s8 + $0x20] sm:$0xff]
      %v1435 = vld [vmem:[%s8 + $0x28] sm:$0xff]
      %v1436 = vld [vmem:[%s8 + $0x30] sm:$0xff]
      %v1437 = vld [vmem:[%s8 + $0x38] sm:$0xff]
      %v1439 = vsel %vm682, %v1398, 0
      %v1442 = vsel %vm682, %v1399, 0
      %v1445 = vsel %vm682, %v1400, 0
      %v1448 = vsel %vm682, %v1401, 0
      %v1451 = vsel %vm682, %v1402, 0
      %v1454 = vsel %vm682, %v1403, 0
      %v1457 = vsel %vm682, %v1404, 0
      %v1460 = vsel %vm682, %v1405, 0
      %v1463 = vsel %vm682, %v1406, 0
      %v1466 = vsel %vm682, %v1407, 0
      %v1469 = vsel %vm682, %v1408, 0
      %v1472 = vsel %vm682, %v1409, 0
      %v1475 = vsel %vm682, %v1410, 0
      %v1478 = vsel %vm682, %v1411, 0
      %v1481 = vsel %vm682, %v1412, 0
      %v1484 = vsel %vm682, %v1413, 0
      %v1487 = vsel %vm682, %v1414, 0
      %v1490 = vsel %vm682, %v1415, 0
      %v1493 = vsel %vm682, %v1416, 0
      %v1496 = vsel %vm682, %v1417, 0
      %v1499 = vsel %vm682, %v1418, 0
      %v1502 = vsel %vm682, %v1419, 0
      %v1505 = vsel %vm682, %v1420, 0
      %v1508 = vsel %vm682, %v1421, 0
      %v1511 = vsel %vm682, %v1422, 0
      %v1514 = vsel %vm682, %v1423, 0
      %v1517 = vsel %vm682, %v1424, 0
      %v1520 = vsel %vm682, %v1425, 0
      %v1523 = vsel %vm682, %v1426, 0
      %v1526 = vsel %vm682, %v1427, 0
      %v1529 = vsel %vm682, %v1428, 0
      %v1532 = vsel %vm682, %v1429, 0
      %1534 = vmatpush.msra.mxu0 0.0
      %1535 = vmatpush.msra.mxu0 0.0
      %1536 = vmatpush.msra.mxu0 0.0
      %1537 = vmatpush.msra.mxu0 0.0
      %1538 = vmatpush.msra.mxu0 0.0
      %1539 = vmatpush.msra.mxu0 0.0
      %1540 = vmatpush.msra.mxu0 0.0
      %1541 = vmatpush.msra.mxu0 0.0
      %1542 = vmatpush.msra.mxu0 %v1437
      %1543 = vmatpush.msra.mxu0 %v1436
      %1544 = vmatpush.msra.mxu0 %v1435
      %1545 = vmatpush.msra.mxu0 %v1434
      %1546 = vmatpush.msra.mxu0 %v1433
      %1547 = vmatpush.msra.mxu0 %v1432
      %1548 = vmatpush.msra.mxu0 %v1431
      %1549 = vmatpush.msra.mxu0 %v1430
      %1550 = vmatmul.f32.gmra.mxu0 %v1439
      %v1551 = vpop.f32.mrf.mxu0
      %v1552 = vadd.f32 0.0, %v1551
      %1553 = vmatmul.f32.gmra.mxu0 %v1442
      %v1554 = vpop.f32.mrf.mxu0
      %v1555 = vadd.f32 0.0, %v1554
      %1556 = vmatmul.f32.gmra.mxu0 %v1445
      %v1557 = vpop.f32.mrf.mxu0
      %v1558 = vadd.f32 0.0, %v1557
      %1559 = vmatmul.f32.gmra.mxu0 %v1448
      %v1560 = vpop.f32.mrf.mxu0
      %v1561 = vadd.f32 0.0, %v1560
      %1562 = vmatmul.f32.gmra.mxu0 %v1451
      %v1563 = vpop.f32.mrf.mxu0
      %v1564 = vadd.f32 0.0, %v1563
      %1565 = vmatmul.f32.gmra.mxu0 %v1454
      %v1566 = vpop.f32.mrf.mxu0
      %v1567 = vadd.f32 0.0, %v1566
      %1568 = vmatmul.f32.gmra.mxu0 %v1457
      %v1569 = vpop.f32.mrf.mxu0
      %v1570 = vadd.f32 0.0, %v1569
      %1571 = vmatmul.f32.gmra.mxu0 %v1460
      %v1572 = vpop.f32.mrf.mxu0
      %v1573 = vadd.f32 0.0, %v1572
      %1574 = vmatmul.f32.gmra.mxu0 %v1463
      %v1575 = vpop.f32.mrf.mxu0
      %v1576 = vadd.f32 0.0, %v1575
      %1577 = vmatmul.f32.gmra.mxu0 %v1466
      %v1578 = vpop.f32.mrf.mxu0
      %v1579 = vadd.f32 0.0, %v1578
      %1580 = vmatmul.f32.gmra.mxu0 %v1469
      %v1581 = vpop.f32.mrf.mxu0
      %v1582 = vadd.f32 0.0, %v1581
      %1583 = vmatmul.f32.gmra.mxu0 %v1472
      %v1584 = vpop.f32.mrf.mxu0
      %v1585 = vadd.f32 0.0, %v1584
      %1586 = vmatmul.f32.gmra.mxu0 %v1475
      %v1587 = vpop.f32.mrf.mxu0
      %v1588 = vadd.f32 0.0, %v1587
      %1589 = vmatmul.f32.gmra.mxu0 %v1478
      %v1590 = vpop.f32.mrf.mxu0
      %v1591 = vadd.f32 0.0, %v1590
      %1592 = vmatmul.f32.gmra.mxu0 %v1481
      %v1593 = vpop.f32.mrf.mxu0
      %v1594 = vadd.f32 0.0, %v1593
      %1595 = vmatmul.f32.gmra.mxu0 %v1484
      %v1596 = vpop.f32.mrf.mxu0
      %v1597 = vadd.f32 0.0, %v1596
      %1598 = vmatmul.f32.gmra.mxu0 %v1487
      %v1599 = vpop.f32.mrf.mxu0
      %v1600 = vadd.f32 0.0, %v1599
      %1601 = vmatmul.f32.gmra.mxu0 %v1490
      %v1602 = vpop.f32.mrf.mxu0
      %v1603 = vadd.f32 0.0, %v1602
      %1604 = vmatmul.f32.gmra.mxu0 %v1493
      %v1605 = vpop.f32.mrf.mxu0
      %v1606 = vadd.f32 0.0, %v1605
      %1607 = vmatmul.f32.gmra.mxu0 %v1496
      %v1608 = vpop.f32.mrf.mxu0
      %v1609 = vadd.f32 0.0, %v1608
      %1610 = vmatmul.f32.gmra.mxu0 %v1499
      %v1611 = vpop.f32.mrf.mxu0
      %v1612 = vadd.f32 0.0, %v1611
      %1613 = vmatmul.f32.gmra.mxu0 %v1502
      %v1614 = vpop.f32.mrf.mxu0
      %v1615 = vadd.f32 0.0, %v1614
      %1616 = vmatmul.f32.gmra.mxu0 %v1505
      %v1617 = vpop.f32.mrf.mxu0
      %v1618 = vadd.f32 0.0, %v1617
      %1619 = vmatmul.f32.gmra.mxu0 %v1508
      %v1620 = vpop.f32.mrf.mxu0
      %v1621 = vadd.f32 0.0, %v1620
      %1622 = vmatmul.f32.gmra.mxu0 %v1511
      %v1623 = vpop.f32.mrf.mxu0
      %v1624 = vadd.f32 0.0, %v1623
      %1625 = vmatmul.f32.gmra.mxu0 %v1514
      %v1626 = vpop.f32.mrf.mxu0
      %v1627 = vadd.f32 0.0, %v1626
      %1628 = vmatmul.f32.gmra.mxu0 %v1517
      %v1629 = vpop.f32.mrf.mxu0
      %v1630 = vadd.f32 0.0, %v1629
      %1631 = vmatmul.f32.gmra.mxu0 %v1520
      %v1632 = vpop.f32.mrf.mxu0
      %v1633 = vadd.f32 0.0, %v1632
      %1634 = vmatmul.f32.gmra.mxu0 %v1523
      %v1635 = vpop.f32.mrf.mxu0
      %v1636 = vadd.f32 0.0, %v1635
      %1637 = vmatmul.f32.gmra.mxu0 %v1526
      %v1638 = vpop.f32.mrf.mxu0
      %v1639 = vadd.f32 0.0, %v1638
      %1640 = vmatmul.f32.gmra.mxu0 %v1529
      %v1641 = vpop.f32.mrf.mxu0
      %v1642 = vadd.f32 0.0, %v1641
      %1643 = vmatmul.f32.gmra.mxu0 %v1532
      %v1644 = vpop.f32.mrf.mxu0
      %v1645 = vadd.f32 0.0, %v1644
      %1646 = vdwg.mxu0
      %v1647 = vadd.f32 %v797, %v1552
      %v1648 = vadd.f32 %v800, %v1555
      %v1649 = vadd.f32 %v803, %v1558
      %v1650 = vadd.f32 %v806, %v1561
      %v1651 = vadd.f32 %v809, %v1564
      %v1652 = vadd.f32 %v812, %v1567
      %v1653 = vadd.f32 %v815, %v1570
      %v1654 = vadd.f32 %v818, %v1573
      %v1655 = vadd.f32 %v821, %v1576
      %v1656 = vadd.f32 %v824, %v1579
      %v1657 = vadd.f32 %v827, %v1582
      %v1658 = vadd.f32 %v830, %v1585
      %v1659 = vadd.f32 %v833, %v1588
      %v1660 = vadd.f32 %v836, %v1591
      %v1661 = vadd.f32 %v839, %v1594
      %v1662 = vadd.f32 %v842, %v1597
      %v1663 = vadd.f32 %v845, %v1600
      %v1664 = vadd.f32 %v848, %v1603
      %v1665 = vadd.f32 %v851, %v1606
      %v1666 = vadd.f32 %v854, %v1609
      %v1667 = vadd.f32 %v857, %v1612
      %v1668 = vadd.f32 %v860, %v1615
      %v1669 = vadd.f32 %v863, %v1618
      %v1670 = vadd.f32 %v866, %v1621
      %v1671 = vadd.f32 %v869, %v1624
      %v1672 = vadd.f32 %v872, %v1627
      %v1673 = vadd.f32 %v875, %v1630
      %v1674 = vadd.f32 %v878, %v1633
      %v1675 = vadd.f32 %v881, %v1636
      %v1676 = vadd.f32 %v884, %v1639
      %v1677 = vadd.f32 %v887, %v1642
      %v1678 = vadd.f32 %v890, %v1645
      %1679 = vst [vmem:[%s356] sm:$0xff] %v1647
      %1680 = vst [vmem:[%s356 + $0x8] sm:$0xff] %v1648
      %1681 = vst [vmem:[%s356 + $0x10] sm:$0xff] %v1649
      %1682 = vst [vmem:[%s356 + $0x18] sm:$0xff] %v1650
      %1683 = vst [vmem:[%s356 + $0x20] sm:$0xff] %v1651
      %1684 = vst [vmem:[%s356 + $0x28] sm:$0xff] %v1652
      %1685 = vst [vmem:[%s356 + $0x30] sm:$0xff] %v1653
      %1686 = vst [vmem:[%s356 + $0x38] sm:$0xff] %v1654
      %1687 = vst [vmem:[%s356 + $0x40] sm:$0xff] %v1655
      %1688 = vst [vmem:[%s356 + $0x48] sm:$0xff] %v1656
      %1689 = vst [vmem:[%s356 + $0x50] sm:$0xff] %v1657
      %1690 = vst [vmem:[%s356 + $0x58] sm:$0xff] %v1658
      %1691 = vst [vmem:[%s356 + $0x60] sm:$0xff] %v1659
      %1692 = vst [vmem:[%s356 + $0x68] sm:$0xff] %v1660
      %1693 = vst [vmem:[%s356 + $0x70] sm:$0xff] %v1661
      %1694 = vst [vmem:[%s356 + $0x78] sm:$0xff] %v1662
      %1695 = vst [vmem:[%s356 + $0x80] sm:$0xff] %v1663
      %1696 = vst [vmem:[%s356 + $0x88] sm:$0xff] %v1664
      %1697 = vst [vmem:[%s356 + $0x90] sm:$0xff] %v1665
      %1698 = vst [vmem:[%s356 + $0x98] sm:$0xff] %v1666
      %1699 = vst [vmem:[%s356 + $0xa0] sm:$0xff] %v1667
      %1700 = vst [vmem:[%s356 + $0xa8] sm:$0xff] %v1668
      %1701 = vst [vmem:[%s356 + $0xb0] sm:$0xff] %v1669
      %1702 = vst [vmem:[%s356 + $0xb8] sm:$0xff] %v1670
      %1703 = vst [vmem:[%s356 + $0xc0] sm:$0xff] %v1671
      %1704 = vst [vmem:[%s356 + $0xc8] sm:$0xff] %v1672
      %1705 = vst [vmem:[%s356 + $0xd0] sm:$0xff] %v1673
      %1706 = vst [vmem:[%s356 + $0xd8] sm:$0xff] %v1674
      %1707 = vst [vmem:[%s356 + $0xe0] sm:$0xff] %v1675
      %1708 = vst [vmem:[%s356 + $0xe8] sm:$0xff] %v1676
      %1709 = vst [vmem:[%s356 + $0xf0] sm:$0xff] %v1677
      %1710 = vst [vmem:[%s356 + $0xf8] sm:$0xff] %v1678
      %s1711 = smul.u32 32, %s20
      %p1712 = scmp.lt.s32.totalorder %s1711, 63
      %s1713 = scalar_select %p1712, %s1711, 63
      %s1714 = smul.addr %s1713, 8
      %s1715 = scalar_lea.vmem %s9, %s1714
      // Predicated region
      $region57: #{vae_forward.1} parent=55 // pred_check
        %p1716 = pneg %p237
      $region58: #{vae_forward.1} parent=55 // pred_check_branch
        %1718 = sbr.rel (%p1716) target = $region60
      $region59: #{vae_forward.1} parent=55 // pred_region
        %s1719 = smul.u32 32, %s20
      $region60: #{vae_forward.1} parent=55 // pred_fallthru
        _
    $region56: #{vae_forward.1} parent=5 // pred_fallthru
      _
    %p1720 = scmp.le.s32.totalorder 2, %s15
    // Predicated region
    $region61: #{vae_forward.1} parent=5 // pred_check
      %p1721 = pneg %p1720
    $region62: #{vae_forward.1} parent=5 // pred_check_branch
      %1723 = sbr.rel (%p1721) target = $region64
    $region63: #{vae_forward.1} parent=5 // pred_region
      %s1724 = ssub.s32 %s15, 2
      // Predicated region
      $region65: #{vae_forward.1} parent=63 // pred_check
        %p1725 = pneg %p243
      $region66: #{vae_forward.1} parent=63 // pred_check_branch
        %1727 = sbr.rel (%p1725) target = $region68
      $region67: #{vae_forward.1} parent=63 // pred_region
        %s1728 = smul.u32 32, %s21
        %p1729 = scmp.lt.s32.totalorder %s1728, 63
        %s1730 = scalar_select %p1729, %s1728, 63
        %s1731 = smul.addr %s1730, 8
        %s1732 = scalar_lea.vmem %s9, %s1731
      $region68: #{vae_forward.1} parent=63 // pred_fallthru
        _
    $region64: #{vae_forward.1} parent=5 // pred_fallthru
      _
  $region6: #{vae_forward.1} parent=0 // loop_footer
    %s19 = sadd.s32 1, %s15
  $region7: #{vae_forward.1} parent=0 // loop_footer_branch
    %14 = sbr.rel target = $region3
  $region8: #{vae_forward.1} parent=0 // loop_exit
    _

</llo_original>
